<compile_context>
chip_gen: v7x
topology: tpu7x:2x2x1
jax: 0.10.0
libtpu: 0.0.40
codegen_flags: <defaults>
</compile_context>

<pallas_src>
import functools

import jax
import jax.numpy as jnp
from jax import lax
from jax.experimental import pallas as pl
from jax.experimental.pallas import tpu as pltpu


_OUT_LANES = 128        # lane-dense result rows (one (8,128) vreg per layer)
_NUM_ROWS = 8
_ROW_FOCAL = 0          # sum of sigmoid focal loss over [B, Q, C]
_ROW_CARD = 1           # cardinality error (already batch-mean)
_ROW_ACC = 2            # number of correctly-classified matched queries
_ROW_L1 = 3             # sum |src - tgt| over matched boxes
_ROW_GIOU = 4           # sum (1 - GIoU) over matched boxes
_NUM_GRID_STEPS = 2     # 2 fat steps: one per TC on v7x, near-zero overhead on v5e/v6e


# ----------------------------------------------------------------------------
# Fused loss kernel: one grid step == ceil(L/2) decoder "layers"
# ----------------------------------------------------------------------------
def _fused_loss_kernel(nvalid_ref, mapidx_ref, logits_ref, tclass_ref,
                       tgtlen_ref, boxes_ref, out_ref, *, num_classes, alpha,
                       layers_per_step):
    """Blocks / refs:
      nvalid_ref : SMEM (1,)      int32  matched-box count (scalar prefetch)
      mapidx_ref : SMEM (Lpad,)   int32  per-layer class-map index (0=normal,1=enc)
      logits_ref : (Lb, B, Q, C)         pred_logits for this step's layers
      tclass_ref : (2, B, Q)      int32  the two distinct target-class maps
      tgtlen_ref : (B, 1)         f32    #GT boxes per image (layer-invariant)
      boxes_ref  : (Lb, 8, Npad)  f32    rows 0-3 src cxcywh, rows 4-7 tgt cxcywh
      out_ref    : (Lb, 8, 128)   f32    row r broadcast with loss-sum r
    """
    step = pl.program_id(0)
    nv = nvalid_ref[0]                                  # matched-box count
    n_pad = boxes_ref.shape[2]

    for l in range(layers_per_step):                    # small static unroll
        x = logits_ref[l].astype(jnp.float32)           # (B, Q, C)
        B, Q, C = x.shape

        # Select this layer's class map (arithmetic blend: avoids a dynamic
        # first-axis ref load; tclass is tiny).
        midx = mapidx_ref[step * layers_per_step + l]    # 0 or 1
        tc = tclass_ref[0] + midx * (tclass_ref[1] - tclass_ref[0])   # (B, Q)

        # ---- one-hot built in-kernel (labels == num_classes -> zero row) ----
        cls_iota = lax.broadcasted_iota(jnp.int32, (B, Q, C), 2)
        t = (cls_iota == tc.reshape(B, Q, 1)).astype(jnp.float32)     # (B,Q,C)

        # ---- sigmoid focal loss (alpha, gamma=2), minimal EUP traffic -------
        e = jnp.exp(-jnp.abs(x))                          # exp once
        r = pl.reciprocal(1.0 + e, approx=True)           # EUP vrcp (cheap)
        sigma = jnp.where(x >= 0.0, r, e * r)              # sigmoid(x)
        # BCE-with-logits: max(x,0) - x*t + log(1 + exp(-|x|))
        ce = jnp.maximum(x, 0.0) - x * t + jnp.log(1.0 + e)
        # p_t = sigma*t + (1-sigma)*(1-t);  alpha_t = alpha*t + (1-alpha)*(1-t)
        p_t = (1.0 - sigma) + (2.0 * sigma - 1.0) * t
        alpha_t = (1.0 - alpha) + (2.0 * alpha - 1.0) * t
        one_m = 1.0 - p_t
        focal_sum = jnp.sum(alpha_t * ce * one_m * one_m)

        # ---- cardinality error (first-index argmax, torch tie-breaking) -----
        maxv = jnp.max(x, axis=-1, keepdims=True)                      # (B,Q,1)
        am = jnp.min(jnp.where(x == maxv, cls_iota, jnp.int32(C)), axis=-1)  # (B,Q)
        non_empty = (am != (C - 1)).astype(jnp.float32)
        card_pred = jnp.sum(non_empty, axis=1, keepdims=True)          # (B,1)
        card_err = jnp.sum(jnp.abs(card_pred - tgtlen_ref[...])) * (1.0 / B)

        # ---- top-1 accuracy numerator (reuse the argmax) ---------------------
        correct = jnp.logical_and(tc < num_classes, am == tc)
        acc_sum = jnp.sum(correct.astype(jnp.float32))

        # ---- box losses, lane-dense [8, Npad] layout -------------------------
        bx = boxes_ref[l]                                               # (8,Npad)
        lane = lax.broadcasted_iota(jnp.int32, (1, n_pad), 1)
        valid = (lane < nv).astype(jnp.float32)                         # (1,Npad)

        l1_sum = jnp.sum(jnp.abs(bx[0:4, :] - bx[4:8, :]) * valid)

        scx, scy, sw, sh = bx[0:1, :], bx[1:2, :], bx[2:3, :], bx[3:4, :]
        tcx, tcy, tw, th = bx[4:5, :], bx[5:6, :], bx[6:7, :], bx[7:8, :]
        sx1, sy1 = scx - 0.5 * sw, scy - 0.5 * sh
        sx2, sy2 = scx + 0.5 * sw, scy + 0.5 * sh
        tx1, ty1 = tcx - 0.5 * tw, tcy - 0.5 * th
        tx2, ty2 = tcx + 0.5 * tw, tcy + 0.5 * th

        area_s = (sx2 - sx1) * (sy2 - sy1)
        area_t = (tx2 - tx1) * (ty2 - ty1)
        ix1 = jnp.maximum(sx1, tx1)
        iy1 = jnp.maximum(sy1, ty1)
        ix2 = jnp.minimum(sx2, tx2)
        iy2 = jnp.minimum(sy2, ty2)
        inter = jnp.maximum(ix2 - ix1, 0.0) * jnp.maximum(iy2 - iy1, 0.0)
        union = area_s + area_t - inter
        iou = inter / jnp.maximum(union, 1e-12)

        cx1 = jnp.minimum(sx1, tx1)
        cy1 = jnp.minimum(sy1, ty1)
        cx2 = jnp.maximum(sx2, tx2)
        cy2 = jnp.maximum(sy2, ty2)
        area_c = jnp.maximum(cx2 - cx1, 0.0) * jnp.maximum(cy2 - cy1, 0.0)
        giou = iou - (area_c - union) / jnp.maximum(area_c, 1e-12)
        giou_sum = jnp.sum((1.0 - giou) * valid)

        # ---- lane-dense result write: one unmasked (8,128) store ------------
        def row(v):
            return jnp.full((1, _OUT_LANES), v, jnp.float32)

        zero = jnp.float32(0.0)
        out_ref[l] = jnp.concatenate(
            [row(focal_sum), row(card_err), row(acc_sum), row(l1_sum),
             row(giou_sum), row(zero), row(zero), row(zero)], axis=0)


@functools.partial(jax.jit, static_argnames=("num_classes", "focal_alpha"))
def fused_criterion_sums(nvalid, mapidx, logits, tclass2, tgt_len, boxes, *,
                         num_classes, focal_alpha):
    """Single pallas_call over all stacked layers; returns [Lpad, 8] loss sums."""
    Lpad, B, Q, C = logits.shape
    n_pad = boxes.shape[2]
    layers_per_step = Lpad // _NUM_GRID_STEPS
    kernel = functools.partial(
        _fused_loss_kernel, num_classes=num_classes, alpha=float(focal_alpha),
        layers_per_step=layers_per_step)
    out = pl.pallas_call(
        kernel,
        out_shape=jax.ShapeDtypeStruct((Lpad, _NUM_ROWS, _OUT_LANES), jnp.float32),
        grid_spec=pltpu.PrefetchScalarGridSpec(
            num_scalar_prefetch=2,            # nvalid, mapidx -> SMEM
            grid=(_NUM_GRID_STEPS,),
            in_specs=[
                pl.BlockSpec((layers_per_step, B, Q, C),
                             lambda s, nv, mi: (s, 0, 0, 0)),
                pl.BlockSpec((2, B, Q), lambda s, nv, mi: (0, 0, 0)),
                pl.BlockSpec((B, 1), lambda s, nv, mi: (0, 0)),
                pl.BlockSpec((layers_per_step, 8, n_pad),
                             lambda s, nv, mi: (s, 0, 0)),
            ],
            out_specs=pl.BlockSpec((layers_per_step, _NUM_ROWS, _OUT_LANES),
                                   lambda s, nv, mi: (s, 0, 0)),
        ),
        compiler_params=pltpu.CompilerParams(
            dimension_semantics=("parallel",)),   # v7x: one fat step per TC
    )(nvalid, mapidx, logits, tclass2, tgt_len, boxes)
    return out[:, :, 0]                            # [Lpad, 8]


# ----------------------------------------------------------------------------
# SetCriterion (JAX / Pallas version)
# ----------------------------------------------------------------------------
class SetCriterionPallas:
    def __init__(self, num_classes, loss_names, focal_alpha=0.25,
                 max_targets_per_image=16):
        self.num_classes = num_classes
        self.loss_names = list(loss_names)
        self.focal_alpha = float(focal_alpha)
        # Static upper bound on GT boxes per image: fixes the matched-box lane
        # padding so the kernel is compiled exactly once.
        self.max_targets_per_image = int(max_targets_per_image)

    # TODO(synk): Hungarian matcher (scipy linear_sum_assignment) has no clean
    # Pallas equivalent; a deterministic identity matching is used instead.
    def _identity_indices(self, lens):
        if sum(lens) == 0:
            return (jnp.zeros((0,), jnp.int32), jnp.zeros((0,), jnp.int32))
        batch_idx = jnp.concatenate(
            [jnp.full((l,), i, jnp.int32) for i, l in enumerate(lens) if l > 0])
        src_idx = jnp.concatenate(
            [jnp.arange(l, dtype=jnp.int32) for l in lens if l > 0])
        return batch_idx, src_idx

    def _assemble_layer_losses(self, loss_names, row, num_boxes, n_matched, log):
        losses = {}
        for name in loss_names:
            if name in losses:
                continue
            if name in ("cls_loss", "accuracy"):
                losses["cls_loss"] = row[_ROW_FOCAL] / num_boxes
                if log:
                    if n_matched > 0:
                        losses["accuracy"] = row[_ROW_ACC] * (100.0 / n_matched)
                    else:
                        losses["accuracy"] = jnp.float32(0.0)
            elif name in ("bbox_loss", "giou_loss"):
                losses["bbox_loss"] = row[_ROW_L1] / num_boxes
                losses["giou_loss"] = row[_ROW_GIOU] / num_boxes
            elif name == "cardinality":
                losses["cardinality"] = row[_ROW_CARD]
            elif name in ("mask_loss", "dice_loss"):
                # TODO(synk): mask/dice losses need NestedTensor + bilinear
                # interpolate; not implemented (segmentation=False path).
                pass
        return losses

    def forward(self, outputs, targets):
        outputs_without_aux = {
            k: v for k, v in outputs.items()
            if k != "aux_outputs" and k != "enc_outputs"}

        # Collect all decoder "layers" (main + aux + enc); every loss term runs
        # in a single fused pallas_call with 2 fat grid steps.
        # layer tuple: (outputs_dict, suffix, loss_names, log_flag, class_map_idx)
        aux_loss_names = [k for k in self.loss_names if k != "masks"]
        aux_log = "accuracy" not in aux_loss_names   # torch kwargs behavior
        layers = [(outputs_without_aux, "", self.loss_names, True, 0)]
        if "aux_outputs" in outputs:
            for i, aux in enumerate(outputs["aux_outputs"]):
                layers.append((aux, f"_{i}", aux_loss_names, aux_log, 0))
        if "enc_outputs" in outputs:
            # enc uses binarized targets (labels -> 0); boxes unchanged.
            layers.append((outputs["enc_outputs"], "_enc", aux_loss_names,
                           aux_log, 1))

        pred_logits = outputs_without_aux["pred_logits"]
        B, Q, _ = pred_logits.shape
        lens = [int(t["labels"].shape[0]) for t in targets]
        n_matched = sum(lens)
        # num_boxes: torch does all_reduce / world_size / clamp(min=1) / .item()
        # TODO(synk): distributed all_reduce over hosts omitted (single host).
        num_boxes = float(max(n_matched, 1))

        # Static lane padding for the matched-box pack (no per-batch recompile).
        npad = max(self.max_targets_per_image * B, 1)
        npad = ((npad + 127) // 128) * 128
        if n_matched > npad:
            raise ValueError(
                f"n_matched={n_matched} exceeds max_targets_per_image*B={npad}")

        batch_idx, src_idx = self._identity_indices(lens)

        # ---- the two distinct target-class maps, Q on lanes ------------------
        # TODO(synk): with a real Hungarian matcher these become per-layer maps.
        tclass_main = jnp.full((B, Q), self.num_classes, jnp.int32)
        tclass_enc = jnp.full((B, Q), self.num_classes, jnp.int32)
        if n_matched > 0:
            labels_o = jnp.concatenate(
                [t["labels"] for t in targets if t["labels"].shape[0] > 0]
            ).astype(jnp.int32)
            tclass_main = tclass_main.at[batch_idx, src_idx].set(labels_o)
            tclass_enc = tclass_enc.at[batch_idx, src_idx].set(0)
        tclass2 = jnp.stack([tclass_main, tclass_enc], axis=0)      # [2, B, Q]

        # ---- matched boxes: rows 0-3 src cxcywh, rows 4-7 tgt cxcywh ---------
        if n_matched > 0:
            tgt_boxes = jnp.concatenate(
                [t["boxes"] for t in targets if t["boxes"].shape[0] > 0],
                axis=0).astype(jnp.float32)                          # [N, 4]
        box_list = []
        for (out_l, _, _, _, _) in layers:
            if n_matched > 0:
                src_b = out_l["pred_boxes"][batch_idx, src_idx].astype(jnp.float32)
                comp = jnp.concatenate([src_b.T, tgt_boxes.T], axis=0)  # [8, N]
                if npad > n_matched:
                    # unit dummy boxes keep the GIoU math finite; masked in-kernel
                    comp = jnp.concatenate(
                        [comp, jnp.full((8, npad - n_matched), 0.5, jnp.float32)],
                        axis=1)
            else:
                comp = jnp.full((8, npad), 0.5, jnp.float32)
            box_list.append(comp)

        # ---- stack layers and pad L to a multiple of the grid steps ----------
        # TODO(synk): if the decoder already emits stacked [L,B,Q,C] logits,
        # feed them here directly and skip this stack copy.
        L = len(layers)
        lb = (L + _NUM_GRID_STEPS - 1) // _NUM_GRID_STEPS
        Lpad = lb * _NUM_GRID_STEPS
        logits = jnp.stack([lyr[0]["pred_logits"] for lyr in layers], axis=0)
        boxes = jnp.stack(box_list, axis=0)                          # [L, 8, npad]
        mapidx_list = [lyr[4] for lyr in layers] + [0] * (Lpad - L)
        if Lpad > L:
            logits = jnp.concatenate(
                [logits, jnp.zeros((Lpad - L, B, Q, logits.shape[-1]),
                                   logits.dtype)], axis=0)
            boxes = jnp.concatenate(
                [boxes, jnp.full((Lpad - L, 8, npad), 0.5, jnp.float32)], axis=0)

        nvalid = jnp.array([n_matched], jnp.int32)                   # SMEM scalar
        mapidx = jnp.array(mapidx_list, jnp.int32)                   # SMEM [Lpad]
        tgt_len = jnp.array([[float(l)] for l in lens], jnp.float32) # [B, 1]

        sums = fused_criterion_sums(
            nvalid, mapidx, logits, tclass2, tgt_len, boxes,
            num_classes=self.num_classes, focal_alpha=self.focal_alpha)  # [Lpad,8]

        losses = {}
        for li, (_, suffix, names, log, _) in enumerate(layers):
            layer_losses = self._assemble_layer_losses(
                names, sums[li], num_boxes, n_matched, log)
            losses.update({k + suffix: v for k, v in layer_losses.items()})
        return losses


# ----------------------------------------------------------------------------
# Example run
# ----------------------------------------------------------------------------
if __name__ == "__main__":
    B, Q, NUM_CLASSES, T = 2, 8, 4, 3   # batch, queries, classes, targets/image

    key = jax.random.PRNGKey(0)
    k1, k2, k3, k4, k5, k6, k7 = jax.random.split(key, 7)

    pred_logits = jax.random.normal(k1, (B, Q, NUM_CLASSES), jnp.float32)
    pred_boxes = jax.nn.sigmoid(jax.random.normal(k2, (B, Q, 4), jnp.float32))
    aux_logits = jax.random.normal(k4, (B, Q, NUM_CLASSES), jnp.float32)
    aux_boxes = jax.nn.sigmoid(jax.random.normal(k5, (B, Q, 4), jnp.float32))
    enc_logits = jax.random.normal(k6, (B, Q, NUM_CLASSES), jnp.float32)
    enc_boxes = jax.nn.sigmoid(jax.random.normal(k7, (B, Q, 4), jnp.float32))

    targets = []
    for i in range(B):
        kt = jax.random.fold_in(k3, i)
        kl, kc, kw = jax.random.split(kt, 3)
        labels = jax.random.randint(kl, (T,), 0, NUM_CLASSES, dtype=jnp.int32)
        cxcy = jax.random.uniform(kc, (T, 2), minval=0.2, maxval=0.8)
        wh = jax.random.uniform(kw, (T, 2), minval=0.05, maxval=0.3)
        targets.append({"labels": labels,
                        "boxes": jnp.concatenate([cxcy, wh], axis=1)})

    outputs = {
        "pred_logits": pred_logits,
        "pred_boxes": pred_boxes,
        "aux_outputs": [{"pred_logits": aux_logits, "pred_boxes": aux_boxes}],
        "enc_outputs": {"pred_logits": enc_logits, "pred_boxes": enc_boxes},
    }

    criterion = SetCriterionPallas(
        num_classes=NUM_CLASSES,
        loss_names=["cls_loss", "accuracy", "bbox_loss", "giou_loss",
                    "cardinality"],
        focal_alpha=0.25,
        max_targets_per_image=8,
    )

    losses = criterion.forward(outputs, targets)
    for v in losses.values():
        jax.block_until_ready(v)
    print("KERNEL_OK")
</pallas_src>

<mosaic_0001>
module attributes {stable_mosaic.version = 11 : i64} {
  func.func @_fused_loss_kernel(%arg0: i32, %arg1: memref<1xi32, #tpu.memory_space<smem>>, %arg2: memref<4xi32, #tpu.memory_space<smem>>, %arg3: memref<2x2x8x4xf32, #tpu.memory_space<vmem>>, %arg4: memref<2x2x8xi32, #tpu.memory_space<vmem>>, %arg5: memref<2x1xf32, #tpu.memory_space<vmem>>, %arg6: memref<2x8x128xf32, #tpu.memory_space<vmem>>, %arg7: memref<2x8x128xf32, #tpu.memory_space<vmem>>) attributes {dimension_semantics = [#tpu.dimension_semantics<parallel>], iteration_bounds = array<i64: 2>, scalar_prefetch = 2 : i64, scratch_operands = 0 : i64, tpu.core_type = #tpu.core_type<tc>, window_params = [{transform_indices = @transform_0, window_bounds = array<i64: 2, 2, 8, 4>}, {pipeline_mode = #tpu.pipeline_mode<synchronous>, transform_indices = @transform_1, window_bounds = array<i64: 2, 2, 8>}, {pipeline_mode = #tpu.pipeline_mode<synchronous>, transform_indices = @transform_2, window_bounds = array<i64: 2, 1>}, {transform_indices = @transform_3, window_bounds = array<i64: 2, 8, 128>}, {transform_indices = @transform_4, window_bounds = array<i64: 2, 8, 128>}]} {
    %c0 = arith.constant 0 : index
    %0 = memref.load %arg1[%c0] : memref<1xi32, #tpu.memory_space<smem>>
    %c0_0 = arith.constant 0 : index
    %c0_1 = arith.constant 0 : index
    %c0_2 = arith.constant 0 : index
    %c0_3 = arith.constant 0 : index
    %1 = vector.load %arg3[%c0_0, %c0_1, %c0_2, %c0_3] : memref<2x2x8x4xf32, #tpu.memory_space<vmem>>, vector<1x2x8x4xf32>
    %2 = vector.shape_cast %1 : vector<1x2x8x4xf32> to vector<2x8x4xf32>
    %c2_i32 = arith.constant 2 : i32
    %3 = arith.muli %arg0, %c2_i32 : i32
    %c0_i32 = arith.constant 0 : i32
    %4 = arith.addi %3, %c0_i32 : i32
    %5 = arith.index_cast %4 : i32 to index
    %6 = memref.load %arg2[%5] : memref<4xi32, #tpu.memory_space<smem>>
    %c0_4 = arith.constant 0 : index
    %c0_5 = arith.constant 0 : index
    %c0_6 = arith.constant 0 : index
    %7 = vector.load %arg4[%c0_4, %c0_5, %c0_6] : memref<2x2x8xi32, #tpu.memory_space<vmem>>, vector<1x2x8xi32>
    %8 = vector.shape_cast %7 : vector<1x2x8xi32> to vector<2x8xi32>
    %c1 = arith.constant 1 : index
    %c0_7 = arith.constant 0 : index
    %c0_8 = arith.constant 0 : index
    %9 = vector.load %arg4[%c1, %c0_7, %c0_8] : memref<2x2x8xi32, #tpu.memory_space<vmem>>, vector<1x2x8xi32>
    %10 = vector.shape_cast %9 : vector<1x2x8xi32> to vector<2x8xi32>
    %c0_9 = arith.constant 0 : index
    %c0_10 = arith.constant 0 : index
    %c0_11 = arith.constant 0 : index
    %11 = vector.load %arg4[%c0_9, %c0_10, %c0_11] : memref<2x2x8xi32, #tpu.memory_space<vmem>>, vector<1x2x8xi32>
    %12 = vector.shape_cast %11 : vector<1x2x8xi32> to vector<2x8xi32>
    %13 = arith.subi %10, %12 : vector<2x8xi32>
    %14 = vector.broadcast %6 : i32 to vector<2x8xi32>
    %15 = arith.muli %14, %13 : vector<2x8xi32>
    %16 = arith.addi %8, %15 : vector<2x8xi32>
    %17 = tpu.iota {dimensions = array<i32: 2>} : vector<2x8x4xi32>
    %18 = vector.shape_cast %16 : vector<2x8xi32> to vector<2x8x1xi32>
    %19 = vector.broadcast %18 : vector<2x8x1xi32> to vector<2x8x4xi32>
    %20 = arith.cmpi eq, %17, %19 : vector<2x8x4xi32>
    %21 = arith.extui %20 : vector<2x8x4xi1> to vector<2x8x4xi32>
    %22 = arith.sitofp %21 : vector<2x8x4xi32> to vector<2x8x4xf32>
    %23 = math.absf %2 : vector<2x8x4xf32>
    %cst = arith.constant 0.000000e+00 : f32
    %24 = vector.broadcast %cst : f32 to vector<2x8x4xf32>
    %25 = arith.subf %24, %23 : vector<2x8x4xf32>
    %26 = math.exp %25 : vector<2x8x4xf32>
    %cst_12 = arith.constant 1.000000e+00 : f32
    %27 = vector.broadcast %cst_12 : f32 to vector<2x8x4xf32>
    %28 = arith.addf %27, %26 : vector<2x8x4xf32>
    %29 = tpu.reciprocal %28 {approx = true} : vector<2x8x4xf32> -> vector<2x8x4xf32>
    %cst_13 = arith.constant 0.000000e+00 : f32
    %30 = vector.broadcast %cst_13 : f32 to vector<2x8x4xf32>
    %31 = arith.cmpf oge, %2, %30 : vector<2x8x4xf32>
    %32 = arith.mulf %26, %29 : vector<2x8x4xf32>
    %33 = arith.select %31, %29, %32 : vector<2x8x4xi1>, vector<2x8x4xf32>
    %cst_14 = arith.constant 0.000000e+00 : f32
    %34 = vector.broadcast %cst_14 : f32 to vector<2x8x4xf32>
    %35 = arith.maximumf %2, %34 : vector<2x8x4xf32>
    %36 = arith.mulf %2, %22 : vector<2x8x4xf32>
    %37 = arith.subf %35, %36 : vector<2x8x4xf32>
    %cst_15 = arith.constant 1.000000e+00 : f32
    %38 = vector.broadcast %cst_15 : f32 to vector<2x8x4xf32>
    %39 = arith.addf %38, %26 : vector<2x8x4xf32>
    %40 = math.log %39 : vector<2x8x4xf32>
    %41 = arith.addf %37, %40 : vector<2x8x4xf32>
    %cst_16 = arith.constant 1.000000e+00 : f32
    %42 = vector.broadcast %cst_16 : f32 to vector<2x8x4xf32>
    %43 = arith.subf %42, %33 : vector<2x8x4xf32>
    %cst_17 = arith.constant 2.000000e+00 : f32
    %44 = vector.broadcast %cst_17 : f32 to vector<2x8x4xf32>
    %45 = arith.mulf %44, %33 : vector<2x8x4xf32>
    %cst_18 = arith.constant 1.000000e+00 : f32
    %46 = vector.broadcast %cst_18 : f32 to vector<2x8x4xf32>
    %47 = arith.subf %45, %46 : vector<2x8x4xf32>
    %48 = arith.mulf %47, %22 : vector<2x8x4xf32>
    %49 = arith.addf %43, %48 : vector<2x8x4xf32>
    %cst_19 = arith.constant -5.000000e-01 : f32
    %50 = vector.broadcast %cst_19 : f32 to vector<2x8x4xf32>
    %51 = arith.mulf %50, %22 : vector<2x8x4xf32>
    %cst_20 = arith.constant 7.500000e-01 : f32
    %52 = vector.broadcast %cst_20 : f32 to vector<2x8x4xf32>
    %53 = arith.addf %52, %51 : vector<2x8x4xf32>
    %cst_21 = arith.constant 1.000000e+00 : f32
    %54 = vector.broadcast %cst_21 : f32 to vector<2x8x4xf32>
    %55 = arith.subf %54, %49 : vector<2x8x4xf32>
    %56 = arith.mulf %53, %41 : vector<2x8x4xf32>
    %57 = arith.mulf %56, %55 : vector<2x8x4xf32>
    %58 = arith.mulf %57, %55 : vector<2x8x4xf32>
    %59 = vector.shape_cast %58 : vector<2x8x4xf32> to vector<1x2x8x4xf32>
    %cst_22 = arith.constant dense<0.000000e+00> : vector<1xf32>
    %60 = vector.multi_reduction <add>, %59, %cst_22 [1, 2, 3] : vector<1x2x8x4xf32> to vector<1xf32>
    %61 = vector.shape_cast %60 : vector<1xf32> to vector<1x1x1x1xf32>
    %62 = vector.extract %61[0, 0, 0, 0] : f32 from vector<1x1x1x1xf32>
    %cst_23 = arith.constant dense<0xFF800000> : vector<2x8xf32>
    %63 = vector.multi_reduction <maximumf>, %2, %cst_23 [2] : vector<2x8x4xf32> to vector<2x8xf32>
    %64 = vector.shape_cast %63 : vector<2x8xf32> to vector<2x8x1xf32>
    %65 = vector.broadcast %64 : vector<2x8x1xf32> to vector<2x8x4xf32>
    %66 = arith.cmpf oeq, %2, %65 : vector<2x8x4xf32>
    %c4_i32 = arith.constant 4 : i32
    %67 = vector.broadcast %c4_i32 : i32 to vector<2x8x4xi32>
    %68 = arith.select %66, %17, %67 : vector<2x8x4xi1>, vector<2x8x4xi32>
    %cst_24 = arith.constant dense<2147483647> : vector<2x8xi32>
    %69 = vector.multi_reduction <minsi>, %68, %cst_24 [2] : vector<2x8x4xi32> to vector<2x8xi32>
    %c3_i32 = arith.constant 3 : i32
    %70 = vector.broadcast %c3_i32 : i32 to vector<2x8xi32>
    %71 = arith.cmpi ne, %69, %70 : vector<2x8xi32>
    %72 = arith.extui %71 : vector<2x8xi1> to vector<2x8xi32>
    %73 = arith.sitofp %72 : vector<2x8xi32> to vector<2x8xf32>
    %cst_25 = arith.constant dense<0.000000e+00> : vector<2xf32>
    %74 = vector.multi_reduction <add>, %73, %cst_25 [1] : vector<2x8xf32> to vector<2xf32>
    %75 = vector.shape_cast %74 : vector<2xf32> to vector<2x1xf32>
    %c0_26 = arith.constant 0 : index
    %c0_27 = arith.constant 0 : index
    %76 = vector.load %arg5[%c0_26, %c0_27] : memref<2x1xf32, #tpu.memory_space<vmem>>, vector<2x1xf32>
    %77 = arith.subf %75, %76 : vector<2x1xf32>
    %78 = math.absf %77 : vector<2x1xf32>
    %79 = vector.shape_cast %78 : vector<2x1xf32> to vector<1x2x1xf32>
    %cst_28 = arith.constant dense<0.000000e+00> : vector<1xf32>
    %80 = vector.multi_reduction <add>, %79, %cst_28 [1, 2] : vector<1x2x1xf32> to vector<1xf32>
    %81 = vector.shape_cast %80 : vector<1xf32> to vector<1x1x1xf32>
    %82 = vector.extract %81[0, 0, 0] : f32 from vector<1x1x1xf32>
    %cst_29 = arith.constant 5.000000e-01 : f32
    %83 = arith.mulf %82, %cst_29 : f32
    %c4_i32_30 = arith.constant 4 : i32
    %84 = vector.broadcast %c4_i32_30 : i32 to vector<2x8xi32>
    %85 = arith.cmpi slt, %16, %84 : vector<2x8xi32>
    %86 = arith.cmpi eq, %69, %16 : vector<2x8xi32>
    %87 = arith.andi %85, %86 : vector<2x8xi1>
    %88 = arith.extui %87 : vector<2x8xi1> to vector<2x8xi32>
    %89 = arith.sitofp %88 : vector<2x8xi32> to vector<2x8xf32>
    %90 = vector.shape_cast %89 : vector<2x8xf32> to vector<1x2x8xf32>
    %cst_31 = arith.constant dense<0.000000e+00> : vector<1xf32>
    %91 = vector.multi_reduction <add>, %90, %cst_31 [1, 2] : vector<1x2x8xf32> to vector<1xf32>
    %92 = vector.shape_cast %91 : vector<1xf32> to vector<1x1x1xf32>
    %93 = vector.extract %92[0, 0, 0] : f32 from vector<1x1x1xf32>
    %c0_32 = arith.constant 0 : index
    %c0_33 = arith.constant 0 : index
    %c0_34 = arith.constant 0 : index
    %94 = vector.load %arg6[%c0_32, %c0_33, %c0_34] : memref<2x8x128xf32, #tpu.memory_space<vmem>>, vector<1x8x128xf32>
    %95 = vector.shape_cast %94 : vector<1x8x128xf32> to vector<8x128xf32>
    %96 = tpu.iota {dimensions = array<i32: 1>} : vector<1x128xi32>
    %97 = vector.broadcast %0 : i32 to vector<1x128xi32>
    %98 = arith.cmpi slt, %96, %97 : vector<1x128xi32>
    %99 = arith.extui %98 : vector<1x128xi1> to vector<1x128xi32>
    %100 = arith.sitofp %99 : vector<1x128xi32> to vector<1x128xf32>
    %101 = vector.extract_strided_slice %95 {offsets = [0, 0], sizes = [4, 128], strides = [1, 1]} : vector<8x128xf32> to vector<4x128xf32>
    %102 = vector.extract_strided_slice %95 {offsets = [4, 0], sizes = [4, 128], strides = [1, 1]} : vector<8x128xf32> to vector<4x128xf32>
    %103 = arith.subf %101, %102 : vector<4x128xf32>
    %104 = math.absf %103 : vector<4x128xf32>
    %105 = vector.broadcast %100 : vector<1x128xf32> to vector<4x128xf32>
    %106 = arith.mulf %104, %105 : vector<4x128xf32>
    %107 = vector.shape_cast %106 : vector<4x128xf32> to vector<1x4x128xf32>
    %cst_35 = arith.constant dense<0.000000e+00> : vector<1xf32>
    %108 = vector.multi_reduction <add>, %107, %cst_35 [1, 2] : vector<1x4x128xf32> to vector<1xf32>
    %109 = vector.shape_cast %108 : vector<1xf32> to vector<1x1x1xf32>
    %110 = vector.extract %109[0, 0, 0] : f32 from vector<1x1x1xf32>
    %111 = vector.extract_strided_slice %95 {offsets = [0, 0], sizes = [1, 128], strides = [1, 1]} : vector<8x128xf32> to vector<1x128xf32>
    %112 = vector.extract_strided_slice %95 {offsets = [1, 0], sizes = [1, 128], strides = [1, 1]} : vector<8x128xf32> to vector<1x128xf32>
    %113 = vector.extract_strided_slice %95 {offsets = [2, 0], sizes = [1, 128], strides = [1, 1]} : vector<8x128xf32> to vector<1x128xf32>
    %114 = vector.extract_strided_slice %95 {offsets = [3, 0], sizes = [1, 128], strides = [1, 1]} : vector<8x128xf32> to vector<1x128xf32>
    %115 = vector.extract_strided_slice %95 {offsets = [4, 0], sizes = [1, 128], strides = [1, 1]} : vector<8x128xf32> to vector<1x128xf32>
    %116 = vector.extract_strided_slice %95 {offsets = [5, 0], sizes = [1, 128], strides = [1, 1]} : vector<8x128xf32> to vector<1x128xf32>
    %117 = vector.extract_strided_slice %95 {offsets = [6, 0], sizes = [1, 128], strides = [1, 1]} : vector<8x128xf32> to vector<1x128xf32>
    %118 = vector.extract_strided_slice %95 {offsets = [7, 0], sizes = [1, 128], strides = [1, 1]} : vector<8x128xf32> to vector<1x128xf32>
    %cst_36 = arith.constant 5.000000e-01 : f32
    %119 = vector.broadcast %cst_36 : f32 to vector<1x128xf32>
    %120 = arith.mulf %119, %113 : vector<1x128xf32>
    %121 = arith.subf %111, %120 : vector<1x128xf32>
    %cst_37 = arith.constant 5.000000e-01 : f32
    %122 = vector.broadcast %cst_37 : f32 to vector<1x128xf32>
    %123 = arith.mulf %122, %114 : vector<1x128xf32>
    %124 = arith.subf %112, %123 : vector<1x128xf32>
    %cst_38 = arith.constant 5.000000e-01 : f32
    %125 = vector.broadcast %cst_38 : f32 to vector<1x128xf32>
    %126 = arith.mulf %125, %113 : vector<1x128xf32>
    %127 = arith.addf %111, %126 : vector<1x128xf32>
    %cst_39 = arith.constant 5.000000e-01 : f32
    %128 = vector.broadcast %cst_39 : f32 to vector<1x128xf32>
    %129 = arith.mulf %128, %114 : vector<1x128xf32>
    %130 = arith.addf %112, %129 : vector<1x128xf32>
    %cst_40 = arith.constant 5.000000e-01 : f32
    %131 = vector.broadcast %cst_40 : f32 to vector<1x128xf32>
    %132 = arith.mulf %131, %117 : vector<1x128xf32>
    %133 = arith.subf %115, %132 : vector<1x128xf32>
    %cst_41 = arith.constant 5.000000e-01 : f32
    %134 = vector.broadcast %cst_41 : f32 to vector<1x128xf32>
    %135 = arith.mulf %134, %118 : vector<1x128xf32>
    %136 = arith.subf %116, %135 : vector<1x128xf32>
    %cst_42 = arith.constant 5.000000e-01 : f32
    %137 = vector.broadcast %cst_42 : f32 to vector<1x128xf32>
    %138 = arith.mulf %137, %117 : vector<1x128xf32>
    %139 = arith.addf %115, %138 : vector<1x128xf32>
    %cst_43 = arith.constant 5.000000e-01 : f32
    %140 = vector.broadcast %cst_43 : f32 to vector<1x128xf32>
    %141 = arith.mulf %140, %118 : vector<1x128xf32>
    %142 = arith.addf %116, %141 : vector<1x128xf32>
    %143 = arith.subf %127, %121 : vector<1x128xf32>
    %144 = arith.subf %130, %124 : vector<1x128xf32>
    %145 = arith.mulf %143, %144 : vector<1x128xf32>
    %146 = arith.subf %139, %133 : vector<1x128xf32>
    %147 = arith.subf %142, %136 : vector<1x128xf32>
    %148 = arith.mulf %146, %147 : vector<1x128xf32>
    %149 = arith.maximumf %121, %133 : vector<1x128xf32>
    %150 = arith.maximumf %124, %136 : vector<1x128xf32>
    %151 = arith.minimumf %127, %139 : vector<1x128xf32>
    %152 = arith.minimumf %130, %142 : vector<1x128xf32>
    %153 = arith.subf %151, %149 : vector<1x128xf32>
    %cst_44 = arith.constant 0.000000e+00 : f32
    %154 = vector.broadcast %cst_44 : f32 to vector<1x128xf32>
    %155 = arith.maximumf %153, %154 : vector<1x128xf32>
    %156 = arith.subf %152, %150 : vector<1x128xf32>
    %cst_45 = arith.constant 0.000000e+00 : f32
    %157 = vector.broadcast %cst_45 : f32 to vector<1x128xf32>
    %158 = arith.maximumf %156, %157 : vector<1x128xf32>
    %159 = arith.mulf %155, %158 : vector<1x128xf32>
    %160 = arith.addf %145, %148 : vector<1x128xf32>
    %161 = arith.subf %160, %159 : vector<1x128xf32>
    %cst_46 = arith.constant 9.99999996E-13 : f32
    %162 = vector.broadcast %cst_46 : f32 to vector<1x128xf32>
    %163 = arith.maximumf %161, %162 : vector<1x128xf32>
    %164 = arith.divf %159, %163 : vector<1x128xf32>
    %165 = arith.minimumf %121, %133 : vector<1x128xf32>
    %166 = arith.minimumf %124, %136 : vector<1x128xf32>
    %167 = arith.maximumf %127, %139 : vector<1x128xf32>
    %168 = arith.maximumf %130, %142 : vector<1x128xf32>
    %169 = arith.subf %167, %165 : vector<1x128xf32>
    %cst_47 = arith.constant 0.000000e+00 : f32
    %170 = vector.broadcast %cst_47 : f32 to vector<1x128xf32>
    %171 = arith.maximumf %169, %170 : vector<1x128xf32>
    %172 = arith.subf %168, %166 : vector<1x128xf32>
    %cst_48 = arith.constant 0.000000e+00 : f32
    %173 = vector.broadcast %cst_48 : f32 to vector<1x128xf32>
    %174 = arith.maximumf %172, %173 : vector<1x128xf32>
    %175 = arith.mulf %171, %174 : vector<1x128xf32>
    %176 = arith.subf %175, %161 : vector<1x128xf32>
    %cst_49 = arith.constant 9.99999996E-13 : f32
    %177 = vector.broadcast %cst_49 : f32 to vector<1x128xf32>
    %178 = arith.maximumf %175, %177 : vector<1x128xf32>
    %179 = arith.divf %176, %178 : vector<1x128xf32>
    %180 = arith.subf %164, %179 : vector<1x128xf32>
    %cst_50 = arith.constant 1.000000e+00 : f32
    %181 = vector.broadcast %cst_50 : f32 to vector<1x128xf32>
    %182 = arith.subf %181, %180 : vector<1x128xf32>
    %183 = arith.mulf %182, %100 : vector<1x128xf32>
    %184 = vector.shape_cast %183 : vector<1x128xf32> to vector<1x1x128xf32>
    %cst_51 = arith.constant dense<0.000000e+00> : vector<1xf32>
    %185 = vector.multi_reduction <add>, %184, %cst_51 [1, 2] : vector<1x1x128xf32> to vector<1xf32>
    %186 = vector.shape_cast %185 : vector<1xf32> to vector<1x1x1xf32>
    %187 = vector.extract %186[0, 0, 0] : f32 from vector<1x1x1xf32>
    %188 = vector.broadcast %62 : f32 to vector<1x128xf32>
    %189 = vector.broadcast %83 : f32 to vector<1x128xf32>
    %190 = vector.broadcast %93 : f32 to vector<1x128xf32>
    %191 = vector.broadcast %110 : f32 to vector<1x128xf32>
    %192 = vector.broadcast %187 : f32 to vector<1x128xf32>
    %cst_52 = arith.constant 0.000000e+00 : f32
    %193 = vector.broadcast %cst_52 : f32 to vector<1x128xf32>
    %cst_53 = arith.constant 0.000000e+00 : f32
    %194 = vector.broadcast %cst_53 : f32 to vector<1x128xf32>
    %cst_54 = arith.constant 0.000000e+00 : f32
    %195 = vector.broadcast %cst_54 : f32 to vector<1x128xf32>
    %196 = tpu.concatenate %188, %189, %190, %191, %192, %193, %194, %195 in 0 : vector<1x128xf32>, vector<1x128xf32>, vector<1x128xf32>, vector<1x128xf32>, vector<1x128xf32>, vector<1x128xf32>, vector<1x128xf32>, vector<1x128xf32> -> vector<8x128xf32>
    %c0_55 = arith.constant 0 : index
    %c0_56 = arith.constant 0 : index
    %c0_57 = arith.constant 0 : index
    %197 = vector.load %arg7[%c0_55, %c0_56, %c0_57] : memref<2x8x128xf32, #tpu.memory_space<vmem>>, vector<1x8x128xf32>
    %198 = vector.shape_cast %197 : vector<1x8x128xf32> to vector<8x128xf32>
    %199 = vector.shape_cast %196 : vector<8x128xf32> to vector<1x8x128xf32>
    tpu.vector_store %arg7[%c0_55, %c0_56, %c0_57], %199 {strides = array<i32>} : memref<2x8x128xf32, #tpu.memory_space<vmem>>, vector<1x8x128xf32>,
    %c1_58 = arith.constant 1 : index
    %c0_59 = arith.constant 0 : index
    %c0_60 = arith.constant 0 : index
    %c0_61 = arith.constant 0 : index
    %200 = vector.load %arg3[%c1_58, %c0_59, %c0_60, %c0_61] : memref<2x2x8x4xf32, #tpu.memory_space<vmem>>, vector<1x2x8x4xf32>
    %201 = vector.shape_cast %200 : vector<1x2x8x4xf32> to vector<2x8x4xf32>
    %c2_i32_62 = arith.constant 2 : i32
    %202 = arith.muli %arg0, %c2_i32_62 : i32
    %c1_i32 = arith.constant 1 : i32
    %203 = arith.addi %202, %c1_i32 : i32
    %204 = arith.index_cast %203 : i32 to index
    %205 = memref.load %arg2[%204] : memref<4xi32, #tpu.memory_space<smem>>
    %c0_63 = arith.constant 0 : index
    %c0_64 = arith.constant 0 : index
    %c0_65 = arith.constant 0 : index
    %206 = vector.load %arg4[%c0_63, %c0_64, %c0_65] : memref<2x2x8xi32, #tpu.memory_space<vmem>>, vector<1x2x8xi32>
    %207 = vector.shape_cast %206 : vector<1x2x8xi32> to vector<2x8xi32>
    %c1_66 = arith.constant 1 : index
    %c0_67 = arith.constant 0 : index
    %c0_68 = arith.constant 0 : index
    %208 = vector.load %arg4[%c1_66, %c0_67, %c0_68] : memref<2x2x8xi32, #tpu.memory_space<vmem>>, vector<1x2x8xi32>
    %209 = vector.shape_cast %208 : vector<1x2x8xi32> to vector<2x8xi32>
    %c0_69 = arith.constant 0 : index
    %c0_70 = arith.constant 0 : index
    %c0_71 = arith.constant 0 : index
    %210 = vector.load %arg4[%c0_69, %c0_70, %c0_71] : memref<2x2x8xi32, #tpu.memory_space<vmem>>, vector<1x2x8xi32>
    %211 = vector.shape_cast %210 : vector<1x2x8xi32> to vector<2x8xi32>
    %212 = arith.subi %209, %211 : vector<2x8xi32>
    %213 = vector.broadcast %205 : i32 to vector<2x8xi32>
    %214 = arith.muli %213, %212 : vector<2x8xi32>
    %215 = arith.addi %207, %214 : vector<2x8xi32>
    %216 = tpu.iota {dimensions = array<i32: 2>} : vector<2x8x4xi32>
    %217 = vector.shape_cast %215 : vector<2x8xi32> to vector<2x8x1xi32>
    %218 = vector.broadcast %217 : vector<2x8x1xi32> to vector<2x8x4xi32>
    %219 = arith.cmpi eq, %216, %218 : vector<2x8x4xi32>
    %220 = arith.extui %219 : vector<2x8x4xi1> to vector<2x8x4xi32>
    %221 = arith.sitofp %220 : vector<2x8x4xi32> to vector<2x8x4xf32>
    %222 = math.absf %201 : vector<2x8x4xf32>
    %cst_72 = arith.constant 0.000000e+00 : f32
    %223 = vector.broadcast %cst_72 : f32 to vector<2x8x4xf32>
    %224 = arith.subf %223, %222 : vector<2x8x4xf32>
    %225 = math.exp %224 : vector<2x8x4xf32>
    %cst_73 = arith.constant 1.000000e+00 : f32
    %226 = vector.broadcast %cst_73 : f32 to vector<2x8x4xf32>
    %227 = arith.addf %226, %225 : vector<2x8x4xf32>
    %228 = tpu.reciprocal %227 {approx = true} : vector<2x8x4xf32> -> vector<2x8x4xf32>
    %cst_74 = arith.constant 0.000000e+00 : f32
    %229 = vector.broadcast %cst_74 : f32 to vector<2x8x4xf32>
    %230 = arith.cmpf oge, %201, %229 : vector<2x8x4xf32>
    %231 = arith.mulf %225, %228 : vector<2x8x4xf32>
    %232 = arith.select %230, %228, %231 : vector<2x8x4xi1>, vector<2x8x4xf32>
    %cst_75 = arith.constant 0.000000e+00 : f32
    %233 = vector.broadcast %cst_75 : f32 to vector<2x8x4xf32>
    %234 = arith.maximumf %201, %233 : vector<2x8x4xf32>
    %235 = arith.mulf %201, %221 : vector<2x8x4xf32>
    %236 = arith.subf %234, %235 : vector<2x8x4xf32>
    %cst_76 = arith.constant 1.000000e+00 : f32
    %237 = vector.broadcast %cst_76 : f32 to vector<2x8x4xf32>
    %238 = arith.addf %237, %225 : vector<2x8x4xf32>
    %239 = math.log %238 : vector<2x8x4xf32>
    %240 = arith.addf %236, %239 : vector<2x8x4xf32>
    %cst_77 = arith.constant 1.000000e+00 : f32
    %241 = vector.broadcast %cst_77 : f32 to vector<2x8x4xf32>
    %242 = arith.subf %241, %232 : vector<2x8x4xf32>
    %cst_78 = arith.constant 2.000000e+00 : f32
    %243 = vector.broadcast %cst_78 : f32 to vector<2x8x4xf32>
    %244 = arith.mulf %243, %232 : vector<2x8x4xf32>
    %cst_79 = arith.constant 1.000000e+00 : f32
    %245 = vector.broadcast %cst_79 : f32 to vector<2x8x4xf32>
    %246 = arith.subf %244, %245 : vector<2x8x4xf32>
    %247 = arith.mulf %246, %221 : vector<2x8x4xf32>
    %248 = arith.addf %242, %247 : vector<2x8x4xf32>
    %cst_80 = arith.constant -5.000000e-01 : f32
    %249 = vector.broadcast %cst_80 : f32 to vector<2x8x4xf32>
    %250 = arith.mulf %249, %221 : vector<2x8x4xf32>
    %cst_81 = arith.constant 7.500000e-01 : f32
    %251 = vector.broadcast %cst_81 : f32 to vector<2x8x4xf32>
    %252 = arith.addf %251, %250 : vector<2x8x4xf32>
    %cst_82 = arith.constant 1.000000e+00 : f32
    %253 = vector.broadcast %cst_82 : f32 to vector<2x8x4xf32>
    %254 = arith.subf %253, %248 : vector<2x8x4xf32>
    %255 = arith.mulf %252, %240 : vector<2x8x4xf32>
    %256 = arith.mulf %255, %254 : vector<2x8x4xf32>
    %257 = arith.mulf %256, %254 : vector<2x8x4xf32>
    %258 = vector.shape_cast %257 : vector<2x8x4xf32> to vector<1x2x8x4xf32>
    %cst_83 = arith.constant dense<0.000000e+00> : vector<1xf32>
    %259 = vector.multi_reduction <add>, %258, %cst_83 [1, 2, 3] : vector<1x2x8x4xf32> to vector<1xf32>
    %260 = vector.shape_cast %259 : vector<1xf32> to vector<1x1x1x1xf32>
    %261 = vector.extract %260[0, 0, 0, 0] : f32 from vector<1x1x1x1xf32>
    %cst_84 = arith.constant dense<0xFF800000> : vector<2x8xf32>
    %262 = vector.multi_reduction <maximumf>, %201, %cst_84 [2] : vector<2x8x4xf32> to vector<2x8xf32>
    %263 = vector.shape_cast %262 : vector<2x8xf32> to vector<2x8x1xf32>
    %264 = vector.broadcast %263 : vector<2x8x1xf32> to vector<2x8x4xf32>
    %265 = arith.cmpf oeq, %201, %264 : vector<2x8x4xf32>
    %c4_i32_85 = arith.constant 4 : i32
    %266 = vector.broadcast %c4_i32_85 : i32 to vector<2x8x4xi32>
    %267 = arith.select %265, %216, %266 : vector<2x8x4xi1>, vector<2x8x4xi32>
    %cst_86 = arith.constant dense<2147483647> : vector<2x8xi32>
    %268 = vector.multi_reduction <minsi>, %267, %cst_86 [2] : vector<2x8x4xi32> to vector<2x8xi32>
    %c3_i32_87 = arith.constant 3 : i32
    %269 = vector.broadcast %c3_i32_87 : i32 to vector<2x8xi32>
    %270 = arith.cmpi ne, %268, %269 : vector<2x8xi32>
    %271 = arith.extui %270 : vector<2x8xi1> to vector<2x8xi32>
    %272 = arith.sitofp %271 : vector<2x8xi32> to vector<2x8xf32>
    %cst_88 = arith.constant dense<0.000000e+00> : vector<2xf32>
    %273 = vector.multi_reduction <add>, %272, %cst_88 [1] : vector<2x8xf32> to vector<2xf32>
    %274 = vector.shape_cast %273 : vector<2xf32> to vector<2x1xf32>
    %c0_89 = arith.constant 0 : index
    %c0_90 = arith.constant 0 : index
    %275 = vector.load %arg5[%c0_89, %c0_90] : memref<2x1xf32, #tpu.memory_space<vmem>>, vector<2x1xf32>
    %276 = arith.subf %274, %275 : vector<2x1xf32>
    %277 = math.absf %276 : vector<2x1xf32>
    %278 = vector.shape_cast %277 : vector<2x1xf32> to vector<1x2x1xf32>
    %cst_91 = arith.constant dense<0.000000e+00> : vector<1xf32>
    %279 = vector.multi_reduction <add>, %278, %cst_91 [1, 2] : vector<1x2x1xf32> to vector<1xf32>
    %280 = vector.shape_cast %279 : vector<1xf32> to vector<1x1x1xf32>
    %281 = vector.extract %280[0, 0, 0] : f32 from vector<1x1x1xf32>
    %cst_92 = arith.constant 5.000000e-01 : f32
    %282 = arith.mulf %281, %cst_92 : f32
    %c4_i32_93 = arith.constant 4 : i32
    %283 = vector.broadcast %c4_i32_93 : i32 to vector<2x8xi32>
    %284 = arith.cmpi slt, %215, %283 : vector<2x8xi32>
    %285 = arith.cmpi eq, %268, %215 : vector<2x8xi32>
    %286 = arith.andi %284, %285 : vector<2x8xi1>
    %287 = arith.extui %286 : vector<2x8xi1> to vector<2x8xi32>
    %288 = arith.sitofp %287 : vector<2x8xi32> to vector<2x8xf32>
    %289 = vector.shape_cast %288 : vector<2x8xf32> to vector<1x2x8xf32>
    %cst_94 = arith.constant dense<0.000000e+00> : vector<1xf32>
    %290 = vector.multi_reduction <add>, %289, %cst_94 [1, 2] : vector<1x2x8xf32> to vector<1xf32>
    %291 = vector.shape_cast %290 : vector<1xf32> to vector<1x1x1xf32>
    %292 = vector.extract %291[0, 0, 0] : f32 from vector<1x1x1xf32>
    %c1_95 = arith.constant 1 : index
    %c0_96 = arith.constant 0 : index
    %c0_97 = arith.constant 0 : index
    %293 = vector.load %arg6[%c1_95, %c0_96, %c0_97] : memref<2x8x128xf32, #tpu.memory_space<vmem>>, vector<1x8x128xf32>
    %294 = vector.shape_cast %293 : vector<1x8x128xf32> to vector<8x128xf32>
    %295 = tpu.iota {dimensions = array<i32: 1>} : vector<1x128xi32>
    %296 = vector.broadcast %0 : i32 to vector<1x128xi32>
    %297 = arith.cmpi slt, %295, %296 : vector<1x128xi32>
    %298 = arith.extui %297 : vector<1x128xi1> to vector<1x128xi32>
    %299 = arith.sitofp %298 : vector<1x128xi32> to vector<1x128xf32>
    %300 = vector.extract_strided_slice %294 {offsets = [0, 0], sizes = [4, 128], strides = [1, 1]} : vector<8x128xf32> to vector<4x128xf32>
    %301 = vector.extract_strided_slice %294 {offsets = [4, 0], sizes = [4, 128], strides = [1, 1]} : vector<8x128xf32> to vector<4x128xf32>
    %302 = arith.subf %300, %301 : vector<4x128xf32>
    %303 = math.absf %302 : vector<4x128xf32>
    %304 = vector.broadcast %299 : vector<1x128xf32> to vector<4x128xf32>
    %305 = arith.mulf %303, %304 : vector<4x128xf32>
    %306 = vector.shape_cast %305 : vector<4x128xf32> to vector<1x4x128xf32>
    %cst_98 = arith.constant dense<0.000000e+00> : vector<1xf32>
    %307 = vector.multi_reduction <add>, %306, %cst_98 [1, 2] : vector<1x4x128xf32> to vector<1xf32>
    %308 = vector.shape_cast %307 : vector<1xf32> to vector<1x1x1xf32>
    %309 = vector.extract %308[0, 0, 0] : f32 from vector<1x1x1xf32>
    %310 = vector.extract_strided_slice %294 {offsets = [0, 0], sizes = [1, 128], strides = [1, 1]} : vector<8x128xf32> to vector<1x128xf32>
    %311 = vector.extract_strided_slice %294 {offsets = [1, 0], sizes = [1, 128], strides = [1, 1]} : vector<8x128xf32> to vector<1x128xf32>
    %312 = vector.extract_strided_slice %294 {offsets = [2, 0], sizes = [1, 128], strides = [1, 1]} : vector<8x128xf32> to vector<1x128xf32>
    %313 = vector.extract_strided_slice %294 {offsets = [3, 0], sizes = [1, 128], strides = [1, 1]} : vector<8x128xf32> to vector<1x128xf32>
    %314 = vector.extract_strided_slice %294 {offsets = [4, 0], sizes = [1, 128], strides = [1, 1]} : vector<8x128xf32> to vector<1x128xf32>
    %315 = vector.extract_strided_slice %294 {offsets = [5, 0], sizes = [1, 128], strides = [1, 1]} : vector<8x128xf32> to vector<1x128xf32>
    %316 = vector.extract_strided_slice %294 {offsets = [6, 0], sizes = [1, 128], strides = [1, 1]} : vector<8x128xf32> to vector<1x128xf32>
    %317 = vector.extract_strided_slice %294 {offsets = [7, 0], sizes = [1, 128], strides = [1, 1]} : vector<8x128xf32> to vector<1x128xf32>
    %cst_99 = arith.constant 5.000000e-01 : f32
    %318 = vector.broadcast %cst_99 : f32 to vector<1x128xf32>
    %319 = arith.mulf %318, %312 : vector<1x128xf32>
    %320 = arith.subf %310, %319 : vector<1x128xf32>
    %cst_100 = arith.constant 5.000000e-01 : f32
    %321 = vector.broadcast %cst_100 : f32 to vector<1x128xf32>
    %322 = arith.mulf %321, %313 : vector<1x128xf32>
    %323 = arith.subf %311, %322 : vector<1x128xf32>
    %cst_101 = arith.constant 5.000000e-01 : f32
    %324 = vector.broadcast %cst_101 : f32 to vector<1x128xf32>
    %325 = arith.mulf %324, %312 : vector<1x128xf32>
    %326 = arith.addf %310, %325 : vector<1x128xf32>
    %cst_102 = arith.constant 5.000000e-01 : f32
    %327 = vector.broadcast %cst_102 : f32 to vector<1x128xf32>
    %328 = arith.mulf %327, %313 : vector<1x128xf32>
    %329 = arith.addf %311, %328 : vector<1x128xf32>
    %cst_103 = arith.constant 5.000000e-01 : f32
    %330 = vector.broadcast %cst_103 : f32 to vector<1x128xf32>
    %331 = arith.mulf %330, %316 : vector<1x128xf32>
    %332 = arith.subf %314, %331 : vector<1x128xf32>
    %cst_104 = arith.constant 5.000000e-01 : f32
    %333 = vector.broadcast %cst_104 : f32 to vector<1x128xf32>
    %334 = arith.mulf %333, %317 : vector<1x128xf32>
    %335 = arith.subf %315, %334 : vector<1x128xf32>
    %cst_105 = arith.constant 5.000000e-01 : f32
    %336 = vector.broadcast %cst_105 : f32 to vector<1x128xf32>
    %337 = arith.mulf %336, %316 : vector<1x128xf32>
    %338 = arith.addf %314, %337 : vector<1x128xf32>
    %cst_106 = arith.constant 5.000000e-01 : f32
    %339 = vector.broadcast %cst_106 : f32 to vector<1x128xf32>
    %340 = arith.mulf %339, %317 : vector<1x128xf32>
    %341 = arith.addf %315, %340 : vector<1x128xf32>
    %342 = arith.subf %326, %320 : vector<1x128xf32>
    %343 = arith.subf %329, %323 : vector<1x128xf32>
    %344 = arith.mulf %342, %343 : vector<1x128xf32>
    %345 = arith.subf %338, %332 : vector<1x128xf32>
    %346 = arith.subf %341, %335 : vector<1x128xf32>
    %347 = arith.mulf %345, %346 : vector<1x128xf32>
    %348 = arith.maximumf %320, %332 : vector<1x128xf32>
    %349 = arith.maximumf %323, %335 : vector<1x128xf32>
    %350 = arith.minimumf %326, %338 : vector<1x128xf32>
    %351 = arith.minimumf %329, %341 : vector<1x128xf32>
    %352 = arith.subf %350, %348 : vector<1x128xf32>
    %cst_107 = arith.constant 0.000000e+00 : f32
    %353 = vector.broadcast %cst_107 : f32 to vector<1x128xf32>
    %354 = arith.maximumf %352, %353 : vector<1x128xf32>
    %355 = arith.subf %351, %349 : vector<1x128xf32>
    %cst_108 = arith.constant 0.000000e+00 : f32
    %356 = vector.broadcast %cst_108 : f32 to vector<1x128xf32>
    %357 = arith.maximumf %355, %356 : vector<1x128xf32>
    %358 = arith.mulf %354, %357 : vector<1x128xf32>
    %359 = arith.addf %344, %347 : vector<1x128xf32>
    %360 = arith.subf %359, %358 : vector<1x128xf32>
    %cst_109 = arith.constant 9.99999996E-13 : f32
    %361 = vector.broadcast %cst_109 : f32 to vector<1x128xf32>
    %362 = arith.maximumf %360, %361 : vector<1x128xf32>
    %363 = arith.divf %358, %362 : vector<1x128xf32>
    %364 = arith.minimumf %320, %332 : vector<1x128xf32>
    %365 = arith.minimumf %323, %335 : vector<1x128xf32>
    %366 = arith.maximumf %326, %338 : vector<1x128xf32>
    %367 = arith.maximumf %329, %341 : vector<1x128xf32>
    %368 = arith.subf %366, %364 : vector<1x128xf32>
    %cst_110 = arith.constant 0.000000e+00 : f32
    %369 = vector.broadcast %cst_110 : f32 to vector<1x128xf32>
    %370 = arith.maximumf %368, %369 : vector<1x128xf32>
    %371 = arith.subf %367, %365 : vector<1x128xf32>
    %cst_111 = arith.constant 0.000000e+00 : f32
    %372 = vector.broadcast %cst_111 : f32 to vector<1x128xf32>
    %373 = arith.maximumf %371, %372 : vector<1x128xf32>
    %374 = arith.mulf %370, %373 : vector<1x128xf32>
    %375 = arith.subf %374, %360 : vector<1x128xf32>
    %cst_112 = arith.constant 9.99999996E-13 : f32
    %376 = vector.broadcast %cst_112 : f32 to vector<1x128xf32>
    %377 = arith.maximumf %374, %376 : vector<1x128xf32>
    %378 = arith.divf %375, %377 : vector<1x128xf32>
    %379 = arith.subf %363, %378 : vector<1x128xf32>
    %cst_113 = arith.constant 1.000000e+00 : f32
    %380 = vector.broadcast %cst_113 : f32 to vector<1x128xf32>
    %381 = arith.subf %380, %379 : vector<1x128xf32>
    %382 = arith.mulf %381, %299 : vector<1x128xf32>
    %383 = vector.shape_cast %382 : vector<1x128xf32> to vector<1x1x128xf32>
    %cst_114 = arith.constant dense<0.000000e+00> : vector<1xf32>
    %384 = vector.multi_reduction <add>, %383, %cst_114 [1, 2] : vector<1x1x128xf32> to vector<1xf32>
    %385 = vector.shape_cast %384 : vector<1xf32> to vector<1x1x1xf32>
    %386 = vector.extract %385[0, 0, 0] : f32 from vector<1x1x1xf32>
    %387 = vector.broadcast %261 : f32 to vector<1x128xf32>
    %388 = vector.broadcast %282 : f32 to vector<1x128xf32>
    %389 = vector.broadcast %292 : f32 to vector<1x128xf32>
    %390 = vector.broadcast %309 : f32 to vector<1x128xf32>
    %391 = vector.broadcast %386 : f32 to vector<1x128xf32>
    %cst_115 = arith.constant 0.000000e+00 : f32
    %392 = vector.broadcast %cst_115 : f32 to vector<1x128xf32>
    %cst_116 = arith.constant 0.000000e+00 : f32
    %393 = vector.broadcast %cst_116 : f32 to vector<1x128xf32>
    %cst_117 = arith.constant 0.000000e+00 : f32
    %394 = vector.broadcast %cst_117 : f32 to vector<1x128xf32>
    %395 = tpu.concatenate %387, %388, %389, %390, %391, %392, %393, %394 in 0 : vector<1x128xf32>, vector<1x128xf32>, vector<1x128xf32>, vector<1x128xf32>, vector<1x128xf32>, vector<1x128xf32>, vector<1x128xf32>, vector<1x128xf32> -> vector<8x128xf32>
    %c1_118 = arith.constant 1 : index
    %c0_119 = arith.constant 0 : index
    %c0_120 = arith.constant 0 : index
    %396 = vector.load %arg7[%c1_118, %c0_119, %c0_120] : memref<2x8x128xf32, #tpu.memory_space<vmem>>, vector<1x8x128xf32>
    %397 = vector.shape_cast %396 : vector<1x8x128xf32> to vector<8x128xf32>
    %398 = vector.shape_cast %395 : vector<8x128xf32> to vector<1x8x128xf32>
    tpu.vector_store %arg7[%c1_118, %c0_119, %c0_120], %398 {strides = array<i32>} : memref<2x8x128xf32, #tpu.memory_space<vmem>>, vector<1x8x128xf32>,
    return
  }
  func.func @transform_0(%arg0: i32, %arg1: memref<1xi32, #tpu.memory_space<smem>>, %arg2: memref<4xi32, #tpu.memory_space<smem>>) -> (i32, i32, i32, i32) {
    %c0_i32 = arith.constant 0 : i32
    %c0_i32_0 = arith.constant 0 : i32
    %c0_i32_1 = arith.constant 0 : i32
    %c0_i32_2 = arith.constant 0 : i32
    return %arg0, %c0_i32, %c0_i32_0, %c0_i32_1 : i32, i32, i32, i32
  }
  func.func @transform_1(%arg0: i32, %arg1: memref<1xi32, #tpu.memory_space<smem>>, %arg2: memref<4xi32, #tpu.memory_space<smem>>) -> (i32, i32, i32) {
    %c0_i32 = arith.constant 0 : i32
    %c0_i32_0 = arith.constant 0 : i32
    %c0_i32_1 = arith.constant 0 : i32
    %c0_i32_2 = arith.constant 0 : i32
    return %c0_i32, %c0_i32_0, %c0_i32_1 : i32, i32, i32
  }
  func.func @transform_2(%arg0: i32, %arg1: memref<1xi32, #tpu.memory_space<smem>>, %arg2: memref<4xi32, #tpu.memory_space<smem>>) -> (i32, i32) {
    %c0_i32 = arith.constant 0 : i32
    %c0_i32_0 = arith.constant 0 : i32
    %c0_i32_1 = arith.constant 0 : i32
    return %c0_i32, %c0_i32_0 : i32, i32
  }
  func.func @transform_3(%arg0: i32, %arg1: memref<1xi32, #tpu.memory_space<smem>>, %arg2: memref<4xi32, #tpu.memory_space<smem>>) -> (i32, i32, i32) {
    %c0_i32 = arith.constant 0 : i32
    %c0_i32_0 = arith.constant 0 : i32
    %c0_i32_1 = arith.constant 0 : i32
    return %arg0, %c0_i32, %c0_i32_0 : i32, i32, i32
  }
  func.func @transform_4(%arg0: i32, %arg1: memref<1xi32, #tpu.memory_space<smem>>, %arg2: memref<4xi32, #tpu.memory_space<smem>>) -> (i32, i32, i32) {
    %c0_i32 = arith.constant 0 : i32
    %c0_i32_0 = arith.constant 0 : i32
    %c0_i32_1 = arith.constant 0 : i32
    return %arg0, %c0_i32, %c0_i32_0 : i32, i32, i32
  }
}

</mosaic_0001>

<llo_original>
// kernel: fused_criterion_sums.1
$region0: #{fused_criterion_sums.1}
  #allocation0 [shape = 'u32[]', space=smem, size = 0x4, offset = 0x4, fixed_abs, tag = 'smem constant byte address 0x4 - core index']
  #allocation1 [shape = 'u32[144,128]{1,0:T(1,128)}', space=vmem, size = 0x12000, scoped, tag = 'internal scratch']
  #allocation2 [shape = 's32[1]{0}', space=sflag, size = 0x4, scoped, tag = 'scoped memory for fused_criterion_sums.1']
  #allocation3 [shape = 's32[1]{0:T(128)S(6)}', space=smem, size = 0x200, scoped, tag = 'prefetched SMEM operand 0']
  #allocation4 [shape = 'u8[512]{0}', space=smem, size = 0x200, scoped, tag = 'prefetched SMEM operand 1']
  %s0 = inlined_call_operand.<no memory space> [shape: s32[1], index: 0, kind: input, shape index: {}]
  %s1 = inlined_call_operand.vmem [shape: s32[4], index: 1, kind: input, shape index: {}]
  %s2 = inlined_call_operand.vmem [shape: f32[4,2,8,4], index: 2, kind: input, shape index: {}]
  %s3 = inlined_call_operand.vmem [shape: s32[2,2,8], index: 3, kind: input, shape index: {}]
  %s4 = inlined_call_operand.vmem [shape: f32[2,1], index: 4, kind: input, shape index: {}]
  %s5 = inlined_call_operand.vmem [shape: f32[4,8,128], index: 5, kind: input, shape index: {}]
  %s6 = inlined_call_operand.vmem [shape: f32[4,8,128], index: 6, kind: output, shape index: {}]
  %s7 = sld [smem:[#allocation0]]
  $region49: #{fused_criterion_sums.1} parent=0
    _
  %s9 = ssub.s32 1, %s7
  %s10 = scalar_select 0, %s9, %s7
  %11 = sst [smem:[#allocation3]] %s0
  %s12 = sshll.u32 %s1, 4
  %s13 = int_to_ptr.vmem [resolvable:$true] %s12
  %15 = dma.vmem_to_smem %s13, 16, [#allocation4], [#allocation2]
  %16 = dma.done [#allocation2], 16
  %17 = sfence
  loop: start=0, step=1, limit=4
  $region2: #{fused_criterion_sums.1} parent=0 // loop_pre_header
    _
  $region3: #{fused_criterion_sums.1} parent=0 // loop_header
    %s19 = sphi 0, %s23
    %p20 = scmp.ge.s32.totalorder %s19, 4
    %s29 = sphi 0, %s31
    %s32 = sphi 0, %s29
    %s33 = sphi 0, %s32
    %s49 = sphi 0, %s33
    %s53 = sphi 0, %s53
    %s55 = sphi 0, %s53
    %s56 = sphi 0, %s55
    %s70 = sphi 0, %s56
    %s74 = sphi 0, %s74
    %s76 = sphi 0, %s74
    %s77 = sphi 0, %s76
    %s91 = sphi 0, %s77
    %s97 = sphi 0, %s99
    %s100 = sphi 0, %s97
    %s101 = sphi 0, %s100
    %s117 = sphi 0, %s101
    %s123 = sphi 0, %s125
    %s126 = sphi 0, %s123
    %s127 = sphi 0, %s126
    %s143 = sphi 0, %s127
  $region4: #{fused_criterion_sums.1} parent=0 // loop_header_branch
    %22 = sbr.rel (%p20) target = $region8
  $region5: #{fused_criterion_sums.1} parent=0 // loop_body
    %s24 = ssub.s32 %s19, 1
    %s25 = ssub.s32 %s19, 2
    %s26 = sadd.s32 %s19, 1
    %s27 = ssub.s32 %s19, %s26
    %p28 = scmp.eq.s32.totalorder %s27, 0
    %s30 = sadd.s32 %s29, 1
    %s31 = scalar_select %p28, %s29, %s30
    %p34 = pneg %p28
    %p35 = scmp.eq.s32.totalorder %s19, 1
    %p36 = por %p34, %p35
    %p37 = scmp.ne.s32.totalorder %s29, %s32
    %p38 = scmp.eq.s32.totalorder %s19, 0
    %p39 = por %p37, %p38
    %p40 = scmp.ne.s32.totalorder %s29, %s32
    %p41 = scmp.eq.s32.totalorder %s24, 1
    %p42 = por %p40, %p41
    %p43 = scmp.ne.s32.totalorder %s32, %s33
    %p44 = scmp.eq.s32.totalorder %s24, 0
    %p45 = por %p43, %p44
    %p46 = scmp.ne.s32.totalorder %s32, %s33
    %p47 = scmp.eq.s32.totalorder %s25, 1
    %p48 = por %p46, %p47
    %p50 = scmp.ne.s32.totalorder %s33, %s49
    %p51 = scmp.eq.s32.totalorder %s25, 0
    %p52 = por %p50, %p51
    %s54 = sadd.s32 %s53, 1
    %p57 = scmp.eq.s32.totalorder %s19, 1
    %p58 = scmp.ne.s32.totalorder %s53, %s55
    %p59 = scmp.eq.s32.totalorder %s19, 0
    %p60 = por %p58, %p59
    %p61 = scmp.ne.s32.totalorder %s53, %s55
    %p62 = scmp.eq.s32.totalorder %s24, 1
    %p63 = por %p61, %p62
    %p64 = scmp.ne.s32.totalorder %s55, %s56
    %p65 = scmp.eq.s32.totalorder %s24, 0
    %p66 = por %p64, %p65
    %p67 = scmp.ne.s32.totalorder %s55, %s56
    %p68 = scmp.eq.s32.totalorder %s25, 1
    %p69 = por %p67, %p68
    %p71 = scmp.ne.s32.totalorder %s56, %s70
    %p72 = scmp.eq.s32.totalorder %s25, 0
    %p73 = por %p71, %p72
    %s75 = sadd.s32 %s74, 1
    %p78 = scmp.eq.s32.totalorder %s19, 1
    %p79 = scmp.ne.s32.totalorder %s74, %s76
    %p80 = scmp.eq.s32.totalorder %s19, 0
    %p81 = por %p79, %p80
    %p82 = scmp.ne.s32.totalorder %s74, %s76
    %p83 = scmp.eq.s32.totalorder %s24, 1
    %p84 = por %p82, %p83
    %p85 = scmp.ne.s32.totalorder %s76, %s77
    %p86 = scmp.eq.s32.totalorder %s24, 0
    %p87 = por %p85, %p86
    %p88 = scmp.ne.s32.totalorder %s76, %s77
    %p89 = scmp.eq.s32.totalorder %s25, 1
    %p90 = por %p88, %p89
    %p92 = scmp.ne.s32.totalorder %s77, %s91
    %p93 = scmp.eq.s32.totalorder %s25, 0
    %p94 = por %p92, %p93
    %s95 = ssub.s32 %s19, %s26
    %p96 = scmp.eq.s32.totalorder %s95, 0
    %s98 = sadd.s32 %s97, 1
    %s99 = scalar_select %p96, %s97, %s98
    %p102 = pneg %p96
    %p103 = scmp.eq.s32.totalorder %s19, 1
    %p104 = por %p102, %p103
    %p105 = scmp.ne.s32.totalorder %s97, %s100
    %p106 = scmp.eq.s32.totalorder %s19, 0
    %p107 = por %p105, %p106
    %p108 = scmp.ne.s32.totalorder %s97, %s100
    %p109 = scmp.eq.s32.totalorder %s24, 1
    %p110 = por %p108, %p109
    %p111 = scmp.ne.s32.totalorder %s100, %s101
    %p112 = scmp.eq.s32.totalorder %s24, 0
    %p113 = por %p111, %p112
    %p114 = scmp.ne.s32.totalorder %s100, %s101
    %p115 = scmp.eq.s32.totalorder %s25, 1
    %p116 = por %p114, %p115
    %p118 = scmp.ne.s32.totalorder %s101, %s117
    %p119 = scmp.eq.s32.totalorder %s25, 0
    %p120 = por %p118, %p119
    %s121 = ssub.s32 %s19, %s26
    %p122 = scmp.eq.s32.totalorder %s121, 0
    %s124 = sadd.s32 %s123, 1
    %s125 = scalar_select %p122, %s123, %s124
    %p128 = pneg %p122
    %p129 = scmp.eq.s32.totalorder %s19, 1
    %p130 = por %p128, %p129
    %p131 = scmp.ne.s32.totalorder %s123, %s126
    %p132 = scmp.eq.s32.totalorder %s19, 0
    %p133 = por %p131, %p132
    %p134 = scmp.ne.s32.totalorder %s123, %s126
    %p135 = scmp.eq.s32.totalorder %s24, 1
    %p136 = por %p134, %p135
    %p137 = scmp.ne.s32.totalorder %s126, %s127
    %p138 = scmp.eq.s32.totalorder %s24, 0
    %p139 = por %p137, %p138
    %p140 = scmp.ne.s32.totalorder %s126, %s127
    %p141 = scmp.eq.s32.totalorder %s25, 1
    %p142 = por %p140, %p141
    %p144 = scmp.ne.s32.totalorder %s127, %s143
    %p145 = scmp.eq.s32.totalorder %s25, 0
    %p146 = por %p144, %p145
    %p147 = scmp.le.s32.totalorder 1, %s19
    %p148 = scmp.lt.s32.totalorder %s19, 3
    %p149 = pnand %p147, %p148
    %p150 = pneg %p149
    // Predicated region
    $region9: #{fused_criterion_sums.1} parent=5 // pred_check
      _
    $region10: #{fused_criterion_sums.1} parent=5 // pred_check_branch
      %152 = sbr.rel (%p149) target = $region12
    $region11: #{fused_criterion_sums.1} parent=5 // pred_region
      %s153 = ssub.s32 %s19, 1
      // Predicated region
      $region13: #{fused_criterion_sums.1} parent=11 // pred_check
        %p154 = pneg %p66
      $region14: #{fused_criterion_sums.1} parent=11 // pred_check_branch
        %156 = sbr.rel (%p154) target = $region16
      $region15: #{fused_criterion_sums.1} parent=11 // pred_region
        _
      $region16: #{fused_criterion_sums.1} parent=11 // pred_fallthru
        _
      // Predicated region
      $region17: #{fused_criterion_sums.1} parent=11 // pred_check
        %p157 = pneg %p87
      $region18: #{fused_criterion_sums.1} parent=11 // pred_check_branch
        %159 = sbr.rel (%p157) target = $region20
      $region19: #{fused_criterion_sums.1} parent=11 // pred_region
        _
      $region20: #{fused_criterion_sums.1} parent=11 // pred_fallthru
        _
    $region12: #{fused_criterion_sums.1} parent=5 // pred_fallthru
      _
    %p160 = scmp.lt.s32.totalorder %s19, 2
    // Predicated region
    $region21: #{fused_criterion_sums.1} parent=5 // pred_check
      %p161 = pneg %p160
    $region22: #{fused_criterion_sums.1} parent=5 // pred_check_branch
      %163 = sbr.rel (%p161) target = $region24
    $region23: #{fused_criterion_sums.1} parent=5 // pred_region
      // Predicated region
      $region25: #{fused_criterion_sums.1} parent=23 // pred_check
        %p164 = pneg %p39
      $region26: #{fused_criterion_sums.1} parent=23 // pred_check_branch
        %166 = sbr.rel (%p164) target = $region28
      $region27: #{fused_criterion_sums.1} parent=23 // pred_region
        %s167 = smul.u32 2, %s19
        %p168 = scmp.lt.s32.totalorder %s167, 3
        %s169 = scalar_select %p168, %s167, 3
        %s170 = smul.addr %s169, 2
        %s171 = smul.addr %s170, 8
        %s172 = scalar_lea.vmem %s2, %s171
        %s173 = smul.u32 2, %s19
      $region28: #{fused_criterion_sums.1} parent=23 // pred_fallthru
        _
      // Predicated region
      $region29: #{fused_criterion_sums.1} parent=23 // pred_check
        %p174 = pneg %p107
      $region30: #{fused_criterion_sums.1} parent=23 // pred_check_branch
        %176 = sbr.rel (%p174) target = $region32
      $region31: #{fused_criterion_sums.1} parent=23 // pred_region
        %s177 = smul.u32 2, %s19
        %p178 = scmp.lt.s32.totalorder %s177, 3
        %s179 = scalar_select %p178, %s177, 3
        %s180 = smul.addr %s179, 8
        %s181 = scalar_lea.vmem %s5, %s180
        %s182 = smul.u32 2, %s19
      $region32: #{fused_criterion_sums.1} parent=23 // pred_fallthru
        _
    $region24: #{fused_criterion_sums.1} parent=5 // pred_fallthru
      _
    %p183 = scmp.le.s32.totalorder 1, %s19
    %p184 = scmp.lt.s32.totalorder %s19, 3
    %p185 = pnand %p183, %p184
    %p186 = pneg %p185
    // Predicated region
    $region33: #{fused_criterion_sums.1} parent=5 // pred_check
      _
    $region34: #{fused_criterion_sums.1} parent=5 // pred_check_branch
      %188 = sbr.rel (%p185) target = $region36
    $region35: #{fused_criterion_sums.1} parent=5 // pred_region
      %s189 = ssub.s32 %s19, 1
      %s190 = smul.u32 2, %s24
      %p191 = scmp.lt.s32.totalorder %s190, 3
      %s192 = scalar_select %p191, %s190, 3
      %s193 = smul.addr %s192, 2
      %s194 = smul.addr %s193, 8
      %s195 = scalar_lea.vmem %s2, %s194
      %p196 = pneg %p45
      %p197 = pneg %p42
      %p198 = pneg %p66
      %p199 = pneg %p63
      %p200 = pneg %p87
      %p201 = pneg %p84
      %s202 = smul.u32 2, %s24
      %p203 = scmp.lt.s32.totalorder %s202, 3
      %s204 = scalar_select %p203, %s202, 3
      %s205 = smul.addr %s204, 8
      %s206 = scalar_lea.vmem %s5, %s205
      %p207 = pneg %p113
      %p208 = pneg %p110
      %p209 = pneg %p139
      %p210 = pneg %p136
      %s211 = smul.u32 2, %s24
      %p212 = scmp.lt.s32.totalorder %s211, 3
      %s213 = scalar_select %p212, %s211, 3
      %s214 = smul.addr %s213, 8
      %s215 = scalar_lea.vmem %s6, %s214
      %s216 = smul.u32 2, %s24
      %p217 = scmp.lt.s32.totalorder %s216, 3
      %s218 = scalar_select %p217, %s216, 3
      %s219 = smul.addr %s218, 2
      %s220 = smul.addr %s219, 8
      %s221 = scalar_lea.vmem %s2, %s220
      %s222 = smul.u32 2, %s24
      %s223 = smul.u32 2, %s24
      %p224 = scmp.lt.s32.totalorder %s223, 3
      %s225 = scalar_select %p224, %s223, 3
      %s226 = smul.addr %s225, 8
      %s227 = scalar_lea.vmem %s5, %s226
      %s228 = smul.u32 2, %s24
      %s229 = smul.u32 2, %s24
      %p230 = scmp.lt.s32.totalorder %s229, 3
      %s231 = scalar_select %p230, %s229, 3
      %s232 = smul.addr %s231, 8
      %s233 = scalar_lea.vmem %s6, %s232
      %s234 = smul.u32 2, %s24
      %s235 = sld [smem:[#allocation3]]
      %v236 = vld [vmem:[%s221] sm:$0xff]
      %v237 = vld [vmem:[%s221 + $0x8] sm:$0xff]
      %s238 = smul.u32 %s24, 2
      %s239 = sld [smem:[#allocation4 + %s238]]
      %v240 = vld [vmem:[%s3] sm:$0x3]
      %s241 = scalar_lea.vmem %s3, 2
      %v242 = vld [vmem:[%s241] sm:$0x3]
      %v243 = vsub.s32 %v242, %v240
      %v244 = vstv %s239
      %v245 = vmul.u32 %v244, %v243
      %v246 = vadd.s32 %v240, %v245
      %v247 = vlaneseq
      %v248 = vand.u32 %v247, 127
      %v249 = vlaneseq
      %v250 = vshrl.u32 %v249, 7
      %v251 = vsub.s32 0, %v250
      %v252 = vrot.slane %v246, %v251
      %254 = vbcast.lane.b32.xlu0 %v252, 256
      %v255 = vpop.permute.xlu0 %254
      %v256 = vlaneseq
      %v257 = vshrl.u32 %v256, 7
      %v258 = vsub.s32 1, %v257
      %v259 = vrot.slane %v246, %v258
      %261 = vbcast.lane.b32.xlu0 %v259, 256
      %v262 = vpop.permute.xlu0 %261
      %vm263 = vcmp.eq.s32.totalorder %v248, %v255
      %vm264 = vcmp.eq.s32.totalorder %v248, %v262
      %v265 = vsel %vm263, 1, 0
      %v266 = vsel %vm264, 1, 0
      %v267 = vcvt.s32.f32 %v265
      %v268 = vcvt.s32.f32 %v266
      %v269 = vand.u32 2147483647, %v236
      %v270 = vand.u32 2147483647, %v237
      %v271 = vsub.f32 0.0, %v269
      %v272 = vsub.f32 0.0, %v270
      %v273 = vmul.f32 %v271, 1.442695
      %v274 = vpow.pop %v273
      %v275 = vmul.f32 %v272, 1.442695
      %v276 = vpow.pop %v275
      %v277 = vadd.f32 %v274, 1.0
      %v278 = vadd.f32 %v276, 1.0
      %v279 = vrcp.pop %v277
      %v280 = vrcp.pop %v278
      %vm281 = vcmp.ge.f32.partialorder %v236, 0.0
      %vm282 = vcmp.ge.f32.partialorder %v237, 0.0
      %v283 = vmul.f32 %v274, %v279
      %v284 = vmul.f32 %v276, %v280
      %v285 = vsel %vm281, %v279, %v283
      %v286 = vsel %vm282, %v280, %v284
      %v287 = vmax.f32 %v236, 0.0
      %v288 = vmax.f32 %v237, 0.0
      %v289 = vmul.f32 %v236, %v267
      %v290 = vmul.f32 %v237, %v268
      %v291 = vsub.f32 %v287, %v289
      %v292 = vsub.f32 %v288, %v290
      %v293 = vlog2.pop %v277
      %v294 = vmul.f32 %v293, 0.6931472
      %v295 = vlog2.pop %v278
      %v296 = vmul.f32 %v295, 0.6931472
      %v297 = vadd.f32 %v291, %v294
      %v298 = vadd.f32 %v292, %v296
      %v299 = vsub.f32 1.0, %v285
      %v300 = vsub.f32 1.0, %v286
      %v301 = vmul.f32 %v285, 2.0
      %v302 = vmul.f32 %v286, 2.0
      %v303 = vsub.f32 %v301, 1.0
      %v304 = vsub.f32 %v302, 1.0
      %v305 = vmul.f32 %v303, %v267
      %v306 = vmul.f32 %v304, %v268
      %v307 = vadd.f32 %v299, %v305
      %v308 = vadd.f32 %v300, %v306
      %v309 = vmul.f32 %v267, -0.5
      %v310 = vmul.f32 %v268, -0.5
      %v311 = vadd.f32 %v309, 0.75
      %v312 = vadd.f32 %v310, 0.75
      %v313 = vsub.f32 1.0, %v307
      %v314 = vsub.f32 1.0, %v308
      %v315 = vmul.f32 %v311, %v297
      %v316 = vmul.f32 %v312, %v298
      %v317 = vmul.f32 %v315, %v313
      %v318 = vmul.f32 %v316, %v314
      %v319 = vmul.f32 %v317, %v313
      %v320 = vmul.f32 %v318, %v314
      %vm321 = vcmask 31744
      %v322 = vsel %vm321, %v319, 0.0
      %v323 = vsel %vm321, %v320, 0.0
      %v324 = vadd.f32 %v322, %v323
      %325 = vadd.xlane.f32.xlu0 %v324
      %v326 = vpop.xlane.xlu0 %325
      %v327 = vrot.slane %v326, 4
      %v328 = vadd.f32 %v326, %v327
      %v329 = vrot.slane %v328, 2
      %v330 = vadd.f32 %v328, %v329
      %v331 = vrot.slane %v330, 1
      %v332 = vadd.f32 %v330, %v331
      %s333 = vtos %v332
      %v334 = vsel %vm321, %v236, -inf
      %335 = vmax.xlane.f32.xlu0 %v334
      %v336 = vpop.xlane.xlu0 %335
      %v337 = vsel %vm321, %v237, -inf
      %338 = vmax.xlane.f32.xlu0 %v337
      %v339 = vpop.xlane.xlu0 %338
      %vm340 = vcmp.eq.f32.partialorder %v236, %v336
      %vm341 = vcmp.eq.f32.partialorder %v237, %v339
      %v342 = vsel %vm340, %v248, 4
      %v343 = vsel %vm341, %v248, 4
      %v344 = vsel %vm321, %v342, 2147483647
      %v345 = vand.u32 %v344, 65535
      %v346 = vshra.s32 %v344, 16
      %v347 = vcvt.s32.f32 %v345
      %v348 = vcvt.s32.f32 %v346
      %349 = vmin.xlane.f32.xlu0 %v348
      %v350 = vpop.xlane.xlu0 %349
      %vm351 = vcmp.eq.f32.partialorder %v348, %v350
      %v352 = vsel %vm351, %v347, inf
      %353 = vmin.xlane.f32.xlu0 %v352
      %v354 = vpop.xlane.xlu0 %353
      %v355 = vcvt.f32.s32 %v354
      %v356 = vcvt.f32.s32 %v350
      %v357 = vshll.u32 %v356, 16
      %v358 = vadd.s32 %v357, %v355
      %v359 = vsel %vm321, %v343, 2147483647
      %v360 = vand.u32 %v359, 65535
      %v361 = vshra.s32 %v359, 16
      %v362 = vcvt.s32.f32 %v360
      %v363 = vcvt.s32.f32 %v361
      %364 = vmin.xlane.f32.xlu0 %v363
      %v365 = vpop.xlane.xlu0 %364
      %vm366 = vcmp.eq.f32.partialorder %v363, %v365
      %v367 = vsel %vm366, %v362, inf
      %368 = vmin.xlane.f32.xlu0 %v367
      %v369 = vpop.xlane.xlu0 %368
      %v370 = vcvt.f32.s32 %v369
      %v371 = vcvt.f32.s32 %v365
      %v372 = vshll.u32 %v371, 16
      %v373 = vadd.s32 %v372, %v370
      %vm374 = vcmp.ne.s32.totalorder %v358, 3
      %vm375 = vcmp.ne.s32.totalorder %v373, 3
      %v376 = vsel %vm374, 1, 0
      %v377 = vsel %vm375, 1, 0
      %v378 = vcvt.s32.f32 %v376
      %v379 = vcvt.s32.f32 %v377
      %v382 = vlaneseq
      %v383 = vshrl.u32 %v382, 7
      %v384 = vsub.s32 %v248, %v383
      %v385 = vrot.slane %v378, %v384
      %v386 = vlaneseq
      %v387 = vshrl.u32 %v386, 7
      %v388 = vsub.s32 %v248, %v387
      %v389 = vrot.slane %v379, %v388
      %vm390 = vcmask 1041409
      %v391 = vsel %vm390, %v389, %v385
      %vm393 = vcmask 58368
      %v394 = vsel %vm393, %v391, 0.0
      %395 = vadd.xlane.f32.xlu0 %v394
      %v396 = vpop.xlane.xlu0 %395
      %v397 = vld [vmem:[%s4] sm:$0x3]
      %v398 = vsub.f32 %v396, %v397
      %v399 = vand.u32 2147483647, %v398
      %vm400 = vcmask 1024
      %v401 = vsel %vm400, %v399, 0.0
      %402 = vadd.xlane.f32.xlu0 %v401
      %v403 = vpop.xlane.xlu0 %402
      %v404 = vrot.slane %v403, 4
      %v405 = vadd.f32 %v403, %v404
      %v406 = vrot.slane %v405, 2
      %v407 = vadd.f32 %v405, %v406
      %v408 = vrot.slane %v407, 1
      %v409 = vadd.f32 %v407, %v408
      %s410 = vtos %v409
      %s411 = smul.f32 %s410, 0.5
      %vm412 = vcmp.lt.s32.totalorder %v246, 4
      %vm413 = vcmp.eq.s32.totalorder %v358, %v255
      %vm414 = vcmp.eq.s32.totalorder %v373, %v262
      %v415 = vsel %vm413, 1, 0
      %v416 = vsel %vm414, 1, 0
      %417 = vset.pattern.permute.xlu0 0
      %418 = vperm.xlu0 %417, %v415
      %v419 = vpop.permute.xlu0 %418
      %420 = vset.pattern.permute.xlu0 0
      %421 = vperm.xlu0 %420, %v416
      %v422 = vpop.permute.xlu0 %421
      %v423 = vlaneseq
      %v424 = vshrl.u32 %v423, 7
      %v425 = vsub.s32 %v248, %v424
      %v426 = vrot.slane %v419, %v425
      %v427 = vlaneseq
      %v428 = vshrl.u32 %v427, 7
      %v429 = vsub.s32 %v248, %v428
      %v430 = vrot.slane %v422, %v429
      %v431 = vsel %vm390, %v430, %v426
      %vm432 = vcmp.ne.s32.totalorder %v431, 0
      %vm433 = vmand %vm412, %vm432
      %v434 = vsel %vm433, 1, 0
      %v435 = vcvt.s32.f32 %v434
      %v436 = vsel %vm393, %v435, 0.0
      %437 = vadd.xlane.f32.xlu0 %v436
      %v438 = vpop.xlane.xlu0 %437
      %v439 = vrot.slane %v438, 4
      %v440 = vadd.f32 %v438, %v439
      %v441 = vrot.slane %v440, 2
      %v442 = vadd.f32 %v440, %v441
      %v443 = vrot.slane %v442, 1
      %v444 = vadd.f32 %v442, %v443
      %s445 = vtos %v444
      %v446 = vld [vmem:[%s227] sm:$0xff]
      %v447 = vstv %s235
      %vm448 = vcmp.lt.s32.totalorder %v248, %v447
      %v449 = vsel %vm448, 1, 0
      %v450 = vcvt.s32.f32 %v449
      %v452 = vrot.slane %v446, 4
      %v454 = vsub.f32 %v446, %v452
      %v455 = vand.u32 2147483647, %v454
      %v456 = vmul.f32 %v455, %v450
      %vm457 = vcmask 1043456
      %v458 = vsel %vm457, %v456, 0.0
      %459 = vadd.xlane.f32.xlu0 %v458
      %v460 = vpop.xlane.xlu0 %459
      %v461 = vrot.slane %v460, 4
      %v462 = vadd.f32 %v460, %v461
      %v463 = vrot.slane %v462, 2
      %v464 = vadd.f32 %v462, %v463
      %v465 = vrot.slane %v464, 1
      %v466 = vadd.f32 %v464, %v465
      %s467 = vtos %v466
      %v468 = vmul.f32 %v446, 0.5
      %v470 = vrot.slane %v468, 2
      %v472 = vsub.f32 %v446, %v470
      %v473 = vadd.f32 %v446, %v470
      %v474 = vsub.f32 %v473, %v472
      %v476 = vrot.slane %v474, 1
      %v478 = vmul.f32 %v474, %v476
      %v480 = vrot.slane %v472, 4
      %v482 = vmax.f32 %v472, %v480
      %v484 = vrot.slane %v473, 4
      %v486 = vmin.f32 %v473, %v484
      %v487 = vsub.f32 %v486, %v482
      %v488 = vmax.f32 %v487, 0.0
      %v490 = vrot.slane %v488, 1
      %v492 = vmul.f32 %v488, %v490
      %v494 = vrot.slane %v478, 4
      %v496 = vadd.f32 %v478, %v494
      %v497 = vsub.f32 %v496, %v492
      %v498 = vmax.f32 %v497, 1e-12
      %v499 = vrcp.pop %v498
      %v500 = vmul.f32 %v492, %v499
      %v501 = vmin.f32 %v472, %v480
      %v502 = vmax.f32 %v473, %v484
      %v503 = vsub.f32 %v502, %v501
      %v504 = vmax.f32 %v503, 0.0
      %v506 = vrot.slane %v504, 1
      %v508 = vmul.f32 %v504, %v506
      %v509 = vsub.f32 %v508, %v497
      %v510 = vmax.f32 %v508, 1e-12
      %v511 = vrcp.pop %v510
      %v512 = vmul.f32 %v509, %v511
      %v513 = vsub.f32 %v500, %v512
      %v514 = vsub.f32 1.0, %v513
      %v515 = vmul.f32 %v514, %v450
      %vm516 = vcmask 1040384
      %v517 = vsel %vm516, %v515, 0.0
      %518 = vadd.xlane.f32.xlu0 %v517
      %v519 = vpop.xlane.xlu0 %518
      %v520 = vrot.slane %v519, 4
      %v521 = vadd.f32 %v519, %v520
      %v522 = vrot.slane %v521, 2
      %v523 = vadd.f32 %v521, %v522
      %v524 = vrot.slane %v523, 1
      %v525 = vadd.f32 %v523, %v524
      %s526 = vtos %v525
      %v527 = vstv %s333
      %v528 = vstv %s411
      %v529 = vstv %s445
      %v530 = vstv %s467
      %v531 = vstv %s526
      %v532 = vsel %vm516, %v527, %v528
      %vm533 = vcmask 1041408
      %v534 = vsel %vm533, %v532, %v529
      %vm535 = vcmask 1042432
      %v536 = vsel %vm535, %v534, %v530
      %v537 = vsel %vm457, %v536, %v531
      %vm538 = vcmask 1044480
      %v539 = vsel %vm538, %v537, 0.0
      %vm540 = vcmask 1045504
      %v541 = vsel %vm540, %v539, 0.0
      %vm542 = vcmask 1046528
      %v543 = vsel %vm542, %v541, 0.0
      %544 = vst [vmem:[%s233] sm:$0xff] %v543
      %s545 = scalar_lea.vmem %s221, 16
      %v546 = vld [vmem:[%s545] sm:$0xff]
      %v547 = vld [vmem:[%s545 + $0x8] sm:$0xff]
      %s548 = sadd.s32 %s238, 1
      %s549 = sld [smem:[#allocation4 + %s548]]
      %v550 = vld [vmem:[%s3] sm:$0x3]
      %v551 = vld [vmem:[%s241] sm:$0x3]
      %v552 = vsub.s32 %v551, %v550
      %v553 = vstv %s549
      %v554 = vmul.u32 %v553, %v552
      %v555 = vadd.s32 %v550, %v554
      %v556 = vlaneseq
      %v557 = vshrl.u32 %v556, 7
      %v558 = vsub.s32 0, %v557
      %v559 = vrot.slane %v555, %v558
      %561 = vbcast.lane.b32.xlu0 %v559, 256
      %v562 = vpop.permute.xlu0 %561
      %v563 = vlaneseq
      %v564 = vshrl.u32 %v563, 7
      %v565 = vsub.s32 1, %v564
      %v566 = vrot.slane %v555, %v565
      %568 = vbcast.lane.b32.xlu0 %v566, 256
      %v569 = vpop.permute.xlu0 %568
      %vm570 = vcmp.eq.s32.totalorder %v248, %v562
      %vm571 = vcmp.eq.s32.totalorder %v248, %v569
      %v572 = vsel %vm570, 1, 0
      %v573 = vsel %vm571, 1, 0
      %v574 = vcvt.s32.f32 %v572
      %v575 = vcvt.s32.f32 %v573
      %v576 = vand.u32 2147483647, %v546
      %v577 = vand.u32 2147483647, %v547
      %v578 = vsub.f32 0.0, %v576
      %v579 = vsub.f32 0.0, %v577
      %v580 = vmul.f32 %v578, 1.442695
      %v581 = vpow.pop %v580
      %v582 = vmul.f32 %v579, 1.442695
      %v583 = vpow.pop %v582
      %v584 = vadd.f32 %v581, 1.0
      %v585 = vadd.f32 %v583, 1.0
      %v586 = vrcp.pop %v584
      %v587 = vrcp.pop %v585
      %vm588 = vcmp.ge.f32.partialorder %v546, 0.0
      %vm589 = vcmp.ge.f32.partialorder %v547, 0.0
      %v590 = vmul.f32 %v581, %v586
      %v591 = vmul.f32 %v583, %v587
      %v592 = vsel %vm588, %v586, %v590
      %v593 = vsel %vm589, %v587, %v591
      %v594 = vmax.f32 %v546, 0.0
      %v595 = vmax.f32 %v547, 0.0
      %v596 = vmul.f32 %v546, %v574
      %v597 = vmul.f32 %v547, %v575
      %v598 = vsub.f32 %v594, %v596
      %v599 = vsub.f32 %v595, %v597
      %v600 = vlog2.pop %v584
      %v601 = vmul.f32 %v600, 0.6931472
      %v602 = vlog2.pop %v585
      %v603 = vmul.f32 %v602, 0.6931472
      %v604 = vadd.f32 %v598, %v601
      %v605 = vadd.f32 %v599, %v603
      %v606 = vsub.f32 1.0, %v592
      %v607 = vsub.f32 1.0, %v593
      %v608 = vmul.f32 %v592, 2.0
      %v609 = vmul.f32 %v593, 2.0
      %v610 = vsub.f32 %v608, 1.0
      %v611 = vsub.f32 %v609, 1.0
      %v612 = vmul.f32 %v610, %v574
      %v613 = vmul.f32 %v611, %v575
      %v614 = vadd.f32 %v606, %v612
      %v615 = vadd.f32 %v607, %v613
      %v616 = vmul.f32 %v574, -0.5
      %v617 = vmul.f32 %v575, -0.5
      %v618 = vadd.f32 %v616, 0.75
      %v619 = vadd.f32 %v617, 0.75
      %v620 = vsub.f32 1.0, %v614
      %v621 = vsub.f32 1.0, %v615
      %v622 = vmul.f32 %v618, %v604
      %v623 = vmul.f32 %v619, %v605
      %v624 = vmul.f32 %v622, %v620
      %v625 = vmul.f32 %v623, %v621
      %v626 = vmul.f32 %v624, %v620
      %v627 = vmul.f32 %v625, %v621
      %v628 = vsel %vm321, %v626, 0.0
      %v629 = vsel %vm321, %v627, 0.0
      %v630 = vadd.f32 %v628, %v629
      %631 = vadd.xlane.f32.xlu0 %v630
      %v632 = vpop.xlane.xlu0 %631
      %v633 = vrot.slane %v632, 4
      %v634 = vadd.f32 %v632, %v633
      %v635 = vrot.slane %v634, 2
      %v636 = vadd.f32 %v634, %v635
      %v637 = vrot.slane %v636, 1
      %v638 = vadd.f32 %v636, %v637
      %s639 = vtos %v638
      %v640 = vsel %vm321, %v546, -inf
      %641 = vmax.xlane.f32.xlu0 %v640
      %v642 = vpop.xlane.xlu0 %641
      %v643 = vsel %vm321, %v547, -inf
      %644 = vmax.xlane.f32.xlu0 %v643
      %v645 = vpop.xlane.xlu0 %644
      %vm646 = vcmp.eq.f32.partialorder %v546, %v642
      %vm647 = vcmp.eq.f32.partialorder %v547, %v645
      %v648 = vsel %vm646, %v248, 4
      %v649 = vsel %vm647, %v248, 4
      %v650 = vsel %vm321, %v648, 2147483647
      %v651 = vand.u32 %v650, 65535
      %v652 = vshra.s32 %v650, 16
      %v653 = vcvt.s32.f32 %v651
      %v654 = vcvt.s32.f32 %v652
      %655 = vmin.xlane.f32.xlu0 %v654
      %v656 = vpop.xlane.xlu0 %655
      %vm657 = vcmp.eq.f32.partialorder %v654, %v656
      %v658 = vsel %vm657, %v653, inf
      %659 = vmin.xlane.f32.xlu0 %v658
      %v660 = vpop.xlane.xlu0 %659
      %v661 = vcvt.f32.s32 %v660
      %v662 = vcvt.f32.s32 %v656
      %v663 = vshll.u32 %v662, 16
      %v664 = vadd.s32 %v663, %v661
      %v665 = vsel %vm321, %v649, 2147483647
      %v666 = vand.u32 %v665, 65535
      %v667 = vshra.s32 %v665, 16
      %v668 = vcvt.s32.f32 %v666
      %v669 = vcvt.s32.f32 %v667
      %670 = vmin.xlane.f32.xlu0 %v669
      %v671 = vpop.xlane.xlu0 %670
      %vm672 = vcmp.eq.f32.partialorder %v669, %v671
      %v673 = vsel %vm672, %v668, inf
      %674 = vmin.xlane.f32.xlu0 %v673
      %v675 = vpop.xlane.xlu0 %674
      %v676 = vcvt.f32.s32 %v675
      %v677 = vcvt.f32.s32 %v671
      %v678 = vshll.u32 %v677, 16
      %v679 = vadd.s32 %v678, %v676
      %vm680 = vcmp.ne.s32.totalorder %v664, 3
      %vm681 = vcmp.ne.s32.totalorder %v679, 3
      %v682 = vsel %vm680, 1, 0
      %v683 = vsel %vm681, 1, 0
      %v684 = vcvt.s32.f32 %v682
      %v685 = vcvt.s32.f32 %v683
      %v688 = vlaneseq
      %v689 = vshrl.u32 %v688, 7
      %v690 = vsub.s32 %v248, %v689
      %v691 = vrot.slane %v684, %v690
      %v692 = vlaneseq
      %v693 = vshrl.u32 %v692, 7
      %v694 = vsub.s32 %v248, %v693
      %v695 = vrot.slane %v685, %v694
      %v696 = vsel %vm390, %v695, %v691
      %v698 = vsel %vm393, %v696, 0.0
      %699 = vadd.xlane.f32.xlu0 %v698
      %v700 = vpop.xlane.xlu0 %699
      %v701 = vld [vmem:[%s4] sm:$0x3]
      %v702 = vsub.f32 %v700, %v701
      %v703 = vand.u32 2147483647, %v702
      %v704 = vsel %vm400, %v703, 0.0
      %705 = vadd.xlane.f32.xlu0 %v704
      %v706 = vpop.xlane.xlu0 %705
      %v707 = vrot.slane %v706, 4
      %v708 = vadd.f32 %v706, %v707
      %v709 = vrot.slane %v708, 2
      %v710 = vadd.f32 %v708, %v709
      %v711 = vrot.slane %v710, 1
      %v712 = vadd.f32 %v710, %v711
      %s713 = vtos %v712
      %s714 = smul.f32 %s713, 0.5
      %vm715 = vcmp.lt.s32.totalorder %v555, 4
      %vm716 = vcmp.eq.s32.totalorder %v664, %v562
      %vm717 = vcmp.eq.s32.totalorder %v679, %v569
      %v718 = vsel %vm716, 1, 0
      %v719 = vsel %vm717, 1, 0
      %720 = vset.pattern.permute.xlu0 0
      %721 = vperm.xlu0 %720, %v718
      %v722 = vpop.permute.xlu0 %721
      %723 = vset.pattern.permute.xlu0 0
      %724 = vperm.xlu0 %723, %v719
      %v725 = vpop.permute.xlu0 %724
      %v726 = vlaneseq
      %v727 = vshrl.u32 %v726, 7
      %v728 = vsub.s32 %v248, %v727
      %v729 = vrot.slane %v722, %v728
      %v730 = vlaneseq
      %v731 = vshrl.u32 %v730, 7
      %v732 = vsub.s32 %v248, %v731
      %v733 = vrot.slane %v725, %v732
      %v734 = vsel %vm390, %v733, %v729
      %vm735 = vcmp.ne.s32.totalorder %v734, 0
      %vm736 = vmand %vm715, %vm735
      %v737 = vsel %vm736, 1, 0
      %v738 = vcvt.s32.f32 %v737
      %v739 = vsel %vm393, %v738, 0.0
      %740 = vadd.xlane.f32.xlu0 %v739
      %v741 = vpop.xlane.xlu0 %740
      %v742 = vrot.slane %v741, 4
      %v743 = vadd.f32 %v741, %v742
      %v744 = vrot.slane %v743, 2
      %v745 = vadd.f32 %v743, %v744
      %v746 = vrot.slane %v745, 1
      %v747 = vadd.f32 %v745, %v746
      %s748 = vtos %v747
      %s749 = scalar_lea.vmem %s227, 8
      %v750 = vld [vmem:[%s749] sm:$0xff]
      %v752 = vrot.slane %v750, 4
      %v754 = vsub.f32 %v750, %v752
      %v755 = vand.u32 2147483647, %v754
      %v756 = vmul.f32 %v755, %v450
      %v757 = vsel %vm457, %v756, 0.0
      %758 = vadd.xlane.f32.xlu0 %v757
      %v759 = vpop.xlane.xlu0 %758
      %v760 = vrot.slane %v759, 4
      %v761 = vadd.f32 %v759, %v760
      %v762 = vrot.slane %v761, 2
      %v763 = vadd.f32 %v761, %v762
      %v764 = vrot.slane %v763, 1
      %v765 = vadd.f32 %v763, %v764
      %s766 = vtos %v765
      %v767 = vmul.f32 %v750, 0.5
      %v769 = vrot.slane %v767, 2
      %v771 = vsub.f32 %v750, %v769
      %v772 = vadd.f32 %v750, %v769
      %v773 = vsub.f32 %v772, %v771
      %v775 = vrot.slane %v773, 1
      %v777 = vmul.f32 %v773, %v775
      %v779 = vrot.slane %v771, 4
      %v781 = vmax.f32 %v771, %v779
      %v783 = vrot.slane %v772, 4
      %v785 = vmin.f32 %v772, %v783
      %v786 = vsub.f32 %v785, %v781
      %v787 = vmax.f32 %v786, 0.0
      %v789 = vrot.slane %v787, 1
      %v791 = vmul.f32 %v787, %v789
      %v793 = vrot.slane %v777, 4
      %v795 = vadd.f32 %v777, %v793
      %v796 = vsub.f32 %v795, %v791
      %v797 = vmax.f32 %v796, 1e-12
      %v798 = vrcp.pop %v797
      %v799 = vmul.f32 %v791, %v798
      %v800 = vmin.f32 %v771, %v779
      %v801 = vmax.f32 %v772, %v783
      %v802 = vsub.f32 %v801, %v800
      %v803 = vmax.f32 %v802, 0.0
      %v805 = vrot.slane %v803, 1
      %v807 = vmul.f32 %v803, %v805
      %v808 = vsub.f32 %v807, %v796
      %v809 = vmax.f32 %v807, 1e-12
      %v810 = vrcp.pop %v809
      %v811 = vmul.f32 %v808, %v810
      %v812 = vsub.f32 %v799, %v811
      %v813 = vsub.f32 1.0, %v812
      %v814 = vmul.f32 %v813, %v450
      %v815 = vsel %vm516, %v814, 0.0
      %816 = vadd.xlane.f32.xlu0 %v815
      %v817 = vpop.xlane.xlu0 %816
      %v818 = vrot.slane %v817, 4
      %v819 = vadd.f32 %v817, %v818
      %v820 = vrot.slane %v819, 2
      %v821 = vadd.f32 %v819, %v820
      %v822 = vrot.slane %v821, 1
      %v823 = vadd.f32 %v821, %v822
      %s824 = vtos %v823
      %v825 = vstv %s639
      %v826 = vstv %s714
      %v827 = vstv %s748
      %v828 = vstv %s766
      %v829 = vstv %s824
      %v830 = vsel %vm516, %v825, %v826
      %v831 = vsel %vm533, %v830, %v827
      %v832 = vsel %vm535, %v831, %v828
      %v833 = vsel %vm457, %v832, %v829
      %v834 = vsel %vm538, %v833, 0.0
      %v835 = vsel %vm540, %v834, 0.0
      %v836 = vsel %vm542, %v835, 0.0
      %s837 = scalar_lea.vmem %s233, 8
      %838 = vst [vmem:[%s837] sm:$0xff] %v836
      %s839 = smul.u32 2, %s24
      %p840 = scmp.lt.s32.totalorder %s839, 3
      %s841 = scalar_select %p840, %s839, 3
      %s842 = smul.addr %s841, 8
      %s843 = scalar_lea.vmem %s6, %s842
      // Predicated region
      $region37: #{fused_criterion_sums.1} parent=35 // pred_check
        %p844 = pneg %p136
      $region38: #{fused_criterion_sums.1} parent=35 // pred_check_branch
        %846 = sbr.rel (%p844) target = $region40
      $region39: #{fused_criterion_sums.1} parent=35 // pred_region
        %s847 = smul.u32 2, %s24
      $region40: #{fused_criterion_sums.1} parent=35 // pred_fallthru
        _
    $region36: #{fused_criterion_sums.1} parent=5 // pred_fallthru
      _
    %p848 = scmp.le.s32.totalorder 2, %s19
    // Predicated region
    $region41: #{fused_criterion_sums.1} parent=5 // pred_check
      %p849 = pneg %p848
    $region42: #{fused_criterion_sums.1} parent=5 // pred_check_branch
      %851 = sbr.rel (%p849) target = $region44
    $region43: #{fused_criterion_sums.1} parent=5 // pred_region
      %s852 = ssub.s32 %s19, 2
      // Predicated region
      $region45: #{fused_criterion_sums.1} parent=43 // pred_check
        %p853 = pneg %p142
      $region46: #{fused_criterion_sums.1} parent=43 // pred_check_branch
        %855 = sbr.rel (%p853) target = $region48
      $region47: #{fused_criterion_sums.1} parent=43 // pred_region
        %s856 = smul.u32 2, %s25
        %p857 = scmp.lt.s32.totalorder %s856, 3
        %s858 = scalar_select %p857, %s856, 3
        %s859 = smul.addr %s858, 8
        %s860 = scalar_lea.vmem %s6, %s859
      $region48: #{fused_criterion_sums.1} parent=43 // pred_fallthru
        _
    $region44: #{fused_criterion_sums.1} parent=5 // pred_fallthru
      _
  $region6: #{fused_criterion_sums.1} parent=0 // loop_footer
    %s23 = sadd.s32 1, %s19
  $region7: #{fused_criterion_sums.1} parent=0 // loop_footer_branch
    %18 = sbr.rel target = $region3
  $region8: #{fused_criterion_sums.1} parent=0 // loop_exit
    _

</llo_original>
